<compile_context>
chip_gen: v5e
topology: v5e:2x2
jax: 0.10.0
libtpu: 0.0.40
codegen_flags: <defaults>
</compile_context>

<pallas_src>
import numpy as np

import jax
import jax.numpy as jnp
from jax.experimental import pallas as pl
from jax.experimental.pallas import tpu as pltpu

KSIZE = 9
PAD = KSIZE // 2
SIGMA = 2.0


# ----------------------------------------------------------------------------
# Host-side constants: Gaussian taps and reflect-folded blur matrices.
# ----------------------------------------------------------------------------
def _gaussian_kernel1d(kernel_size: int, sigma: float):
    half = (kernel_size - 1) * 0.5
    xs = np.linspace(-half, half, kernel_size)
    pdf = np.exp(-0.5 * (xs / sigma) ** 2)
    return pdf / pdf.sum()                     # float64, length KSIZE


def _reflect_blur_matrix(n: int, k1d):
    """(n, n) matrix B so (B @ v)[i] = sum_t k[t] * v[reflect(i + t - PAD)].

    Reflect is torch/np 'reflect' (edge pixel excluded); requires n > PAD.
    """
    B = np.zeros((n, n), dtype=np.float64)
    for i in range(n):
        for t in range(KSIZE):
            j = i + t - PAD
            if j < 0:
                j = -j
            elif j >= n:
                j = 2 * (n - 1) - j
            B[i, j] += k1d[t]
    return B


def _vmem_capacity_bytes():
    try:
        return int(pltpu.get_tpu_info().vmem_capacity_bytes)
    except Exception:
        return 64 << 20        # conservative (v7x-sized) default


# ----------------------------------------------------------------------------
# Pass 1a (small images): flattened blur via ONE MXU matmul, lane-dense z.
# ----------------------------------------------------------------------------
def _blur_flat_kernel(x_ref, m_ref, z_ref, mn_ref, mx_ref):
    x = x_ref[...].astype(jnp.float32)                       # (rb, HW)
    y = jnp.dot(x, m_ref[...],
                precision=jax.lax.Precision.HIGHEST,
                preferred_element_type=jnp.float32)           # MXU, f32 accurate
    z = jnp.abs(x - y)
    z_ref[...] = z                                            # lane-dense store
    row_mn = jnp.min(z, axis=-1, keepdims=True)               # (rb, 1)
    row_mx = jnp.max(z, axis=-1, keepdims=True)
    mn_ref[0] = jnp.min(row_mn, axis=0, keepdims=True)        # (1, 1)
    mx_ref[0] = jnp.max(row_mx, axis=0, keepdims=True)


# ----------------------------------------------------------------------------
# Pass 1b (large images): separable blur, y = B_H @ x @ B_W^T, batched over Cb.
# ----------------------------------------------------------------------------
def _blur_sep_kernel(x_ref, bh_ref, bwt_ref, z_ref, mn_ref, mx_ref):
    x = x_ref[0].astype(jnp.float32)                          # (Cb, H, W)
    cb, H, W = x.shape
    bwt = jnp.broadcast_to(bwt_ref[...], (cb, W, W))          # B_W^T
    bh = jnp.broadcast_to(bh_ref[...], (cb, H, H))            # B_H
    # t[c,h,w] = sum_j x[c,h,j] * B_W[w,j]
    t = jax.lax.dot_general(x, bwt, (((2,), (1,)), ((0,), (0,))),
                            precision=jax.lax.Precision.HIGHEST,
                            preferred_element_type=jnp.float32)
    # y[c,h,w] = sum_i B_H[h,i] * t[c,i,w]
    y = jax.lax.dot_general(bh, t, (((2,), (1,)), ((0,), (0,))),
                            precision=jax.lax.Precision.HIGHEST,
                            preferred_element_type=jnp.float32)
    z = jnp.abs(x - y)                                        # (Cb, H, W)
    z_ref[0] = z
    m = jnp.min(jnp.min(z, axis=-1, keepdims=True), axis=-2, keepdims=True)
    mn_ref[0] = jnp.min(m, axis=0, keepdims=True)             # (1, 1, 1)
    m = jnp.max(jnp.max(z, axis=-1, keepdims=True), axis=-2, keepdims=True)
    mx_ref[0] = jnp.max(m, axis=0, keepdims=True)


# ----------------------------------------------------------------------------
# Pass 2: fused affine + tanh.  out = tanh(hs * z + hb)
#         (divide / where / relu / 2*sigmoid-1 all folded into hs, hb)
# ----------------------------------------------------------------------------
def _mask_kernel(params_ref, z_ref, o_ref):
    # params_ref (SMEM, (2,)): [0.5*scale, 0.5*bias]
    o_ref[...] = jnp.tanh(params_ref[0] * z_ref[...] + params_ref[1])


# ----------------------------------------------------------------------------
# Block-size heuristics (derived from the actual VMEM capacity).
# ----------------------------------------------------------------------------
def _pick_row_block(nc, hw, itemsize, cap):
    """Row block for the flattened (N*C, H*W) pass-1 path."""
    budget = max(cap // 16, 1 << 20)           # per-array block budget
    sub = max(8, 32 // max(1, itemsize))       # sublane multiple for this dtype
    divs = [d for d in range(1, nc + 1)
            if nc % d == 0 and (d % sub == 0 or d == nc)]
    fits = [d for d in divs if 4 * d * hw * 4 <= budget]
    if not fits:
        fits = [min(divs)]
    # Prefer the largest block that still leaves >=4 grid steps (2-TC balance).
    for d in sorted(fits, reverse=True):
        if nc // d >= 4:
            return d
    return max(fits)


def _pick_channel_block(C, H, W, cap):
    """Channel block for the separable pass-1 path (~8 f32 planes live/chan)."""
    budget = max(cap // 8, 2 << 20)
    per_chan = H * W * 4 * 8
    max_cb = max(1, budget // per_chan)
    divs = [d for d in range(1, C + 1) if C % d == 0 and d <= max_cb]
    return max(divs) if divs else 1
    # TODO(synk): add H-strip tiling with an 8-row halo (manual DMA from an
    # ANY-space x) so a single (1, cb, H, W) block never exceeds v7x's 64 MiB
    # VMEM for very large H*W.


def _pick_flat_shape(total, cap):
    """(lane, row_block) for the lane-dense pass-2 slab, or (None, None)."""
    lane = None
    for cand in (2048, 1024, 512, 256, 128):
        if total % cand == 0:
            lane = cand
            break
    if lane is None:
        return None, None
    rows = total // lane
    tile_budget = min(4 << 20, max(cap // 16, 1 << 20))
    tr = rows
    for cand in (16384, 8192, 4096, 2048, 1024, 512, 256, 128, 64, 32, 16, 8):
        if rows % cand == 0 and cand * lane * 4 <= tile_budget:
            tr = cand
            break
    return lane, tr


# ----------------------------------------------------------------------------
# Wrapper
# ----------------------------------------------------------------------------
def mask_block(x, alpha, betta, sigma=SIGMA):
    """Pallas implementation of MaskBlock.forward.  x: (N, C, H, W)."""
    N, C, H, W = x.shape
    if H <= PAD or W <= PAD:
        raise ValueError("reflect padding requires H, W > 4")
    k1d = _gaussian_kernel1d(KSIZE, sigma)

    cap = _vmem_capacity_bytes()
    vmem_limit = int(min(cap * 3 // 4, 100 << 20))
    HW = H * W
    NC = N * C

    use_flat = HW * HW * 4 <= (4 << 20)        # kron matrix <= 4 MiB

    if use_flat:
        # Single blur matrix folding reflect + both 1D taps: y = x_flat @ MT.
        MT = np.kron(_reflect_blur_matrix(H, k1d),
                     _reflect_blur_matrix(W, k1d)).T
        MT = jnp.asarray(MT, jnp.float32)                     # (HW, HW)
        rb = _pick_row_block(NC, HW, jnp.dtype(x.dtype).itemsize, cap)
        G = NC // rb
        x2 = x.reshape(NC, HW)                                # free (contiguous)
        z, mn_p, mx_p = pl.pallas_call(
            _blur_flat_kernel,
            out_shape=(
                jax.ShapeDtypeStruct((NC, HW), jnp.float32),
                jax.ShapeDtypeStruct((G, 1, 1), jnp.float32),
                jax.ShapeDtypeStruct((G, 1, 1), jnp.float32),
            ),
            grid=(G,),
            in_specs=[pl.BlockSpec((rb, HW), lambda g: (g, 0)),
                      pl.BlockSpec((HW, HW), lambda g: (0, 0))],
            out_specs=(
                pl.BlockSpec((rb, HW), lambda g: (g, 0)),
                pl.BlockSpec((1, 1, 1), lambda g: (g, 0, 0)),
                pl.BlockSpec((1, 1, 1), lambda g: (g, 0, 0)),
            ),
            compiler_params=pltpu.CompilerParams(
                dimension_semantics=("parallel",),
                vmem_limit_bytes=vmem_limit),
        )(x2, MT)
    else:
        BH = jnp.asarray(_reflect_blur_matrix(H, k1d), jnp.float32)      # (H, H)
        BWT = jnp.asarray(_reflect_blur_matrix(W, k1d).T, jnp.float32)   # (W, W)
        cb = _pick_channel_block(C, H, W, cap)
        nb = C // cb
        z, mn_p, mx_p = pl.pallas_call(
            _blur_sep_kernel,
            out_shape=(
                jax.ShapeDtypeStruct((N, C, H, W), jnp.float32),
                jax.ShapeDtypeStruct((N, nb, 1, 1), jnp.float32),
                jax.ShapeDtypeStruct((N, nb, 1, 1), jnp.float32),
            ),
            grid=(N, nb),
            in_specs=[pl.BlockSpec((1, cb, H, W), lambda n, c: (n, c, 0, 0)),
                      pl.BlockSpec((H, H), lambda n, c: (0, 0)),
                      pl.BlockSpec((W, W), lambda n, c: (0, 0))],
            out_specs=(
                pl.BlockSpec((1, cb, H, W), lambda n, c: (n, c, 0, 0)),
                pl.BlockSpec((1, 1, 1, 1), lambda n, c: (n, c, 0, 0)),
                pl.BlockSpec((1, 1, 1, 1), lambda n, c: (n, c, 0, 0)),
            ),
            compiler_params=pltpu.CompilerParams(
                dimension_semantics=("parallel", "parallel"),
                vmem_limit_bytes=vmem_limit),
        )(x, BH, BWT)

    # Tiny global min/max finish + fold normalise/alpha/betta/sigmoid into one
    # affine + tanh:  2*sigmoid(s*z + b) - 1 == tanh(0.5*(s*z + b)).
    zmin = jnp.min(mn_p)
    denom = jnp.max(mx_p) - zmin                    # == max(z - min(z))
    inv = jnp.where(denom > 0.0, 1.0 / denom, 1.0)  # scalar guard, done once
    alpha_f = jnp.asarray(alpha, jnp.float32)
    betta_f = jnp.asarray(betta, jnp.float32)
    scale = alpha_f * inv
    bias = -alpha_f * (zmin * inv + jnp.maximum(betta_f, 0.0))
    params = jnp.stack([0.5 * scale, 0.5 * bias]).astype(jnp.float32)

    total = N * C * H * W
    lane, tr = _pick_flat_shape(total, cap)
    if lane is not None:
        rows = total // lane
        z2 = z.reshape(rows, lane)                  # lane-dense slab (free)
        out = pl.pallas_call(
            _mask_kernel,
            out_shape=jax.ShapeDtypeStruct((rows, lane), jnp.float32),
            grid=(rows // tr,),
            in_specs=[pl.BlockSpec(memory_space=pltpu.MemorySpace.SMEM),
                      pl.BlockSpec((tr, lane), lambda i: (i, 0))],
            out_specs=pl.BlockSpec((tr, lane), lambda i: (i, 0)),
            input_output_aliases={1: 0},            # z is dead after this pass
            compiler_params=pltpu.CompilerParams(
                dimension_semantics=("parallel",),
                vmem_limit_bytes=vmem_limit),
        )(params, z2)
        return out.reshape(N, C, H, W)

    # Fallback (total not a multiple of 128): per-plane blocks.
    z4 = z.reshape(N, C, H, W)
    return pl.pallas_call(
        _mask_kernel,
        out_shape=jax.ShapeDtypeStruct((N, C, H, W), jnp.float32),
        grid=(N, C),
        in_specs=[pl.BlockSpec(memory_space=pltpu.MemorySpace.SMEM),
                  pl.BlockSpec((1, 1, H, W), lambda n, c: (n, c, 0, 0))],
        out_specs=pl.BlockSpec((1, 1, H, W), lambda n, c: (n, c, 0, 0)),
        input_output_aliases={1: 0},
        compiler_params=pltpu.CompilerParams(
            dimension_semantics=("parallel", "parallel"),
            vmem_limit_bytes=vmem_limit),
    )(params, z4)


# ----------------------------------------------------------------------------
# Pure-JAX reference (elementwise taps only => exact f32; correctness check)
# ----------------------------------------------------------------------------
def mask_block_ref(x, alpha, betta, sigma=SIGMA):
    x = x.astype(jnp.float32)
    N, C, H, W = x.shape
    k = [float(v) for v in _gaussian_kernel1d(KSIZE, sigma)]
    xp = jnp.pad(x, ((0, 0), (0, 0), (PAD, PAD), (PAD, PAD)), mode="reflect")
    tmp = sum(k[j] * xp[:, :, :, j:j + W] for j in range(KSIZE))   # (N,C,H+8,W)
    y = sum(k[i] * tmp[:, :, i:i + H, :] for i in range(KSIZE))    # (N,C,H,W)
    z = jnp.abs(x - y)
    z = z - jnp.min(z)
    mx = jnp.max(z)
    z = jnp.where(mx > 0, z / mx, z)
    z = jnp.asarray(alpha, jnp.float32) * (
        z - jax.nn.relu(jnp.asarray(betta, jnp.float32)))
    return 2.0 * jax.nn.sigmoid(z) - 1.0


if __name__ == "__main__":
    key = jax.random.PRNGKey(0)
    N, C, H, W = 2, 4, 16, 16
    x = jax.random.normal(key, (N, C, H, W), dtype=jnp.float32)

    # Deterministic parameter init, identical to the PyTorch module __init__.
    alpha = jnp.float32(7.0)
    betta = jnp.float32(1.0)

    out = mask_block(x, alpha, betta)
    out = jax.block_until_ready(out)

    ref = mask_block_ref(x, alpha, betta)
    assert out.shape == (N, C, H, W)
    np.testing.assert_allclose(np.asarray(out), np.asarray(ref),
                               rtol=1e-4, atol=1e-4)
    print("KERNEL_OK")
</pallas_src>

<mosaic_0001>
module attributes {stable_mosaic.version = 11 : i64} {
  func.func @_blur_flat_kernel(%arg0: i32, %arg1: memref<8x256xf32, #tpu.memory_space<vmem>>, %arg2: memref<256x256xf32, #tpu.memory_space<vmem>>, %arg3: memref<8x256xf32, #tpu.memory_space<vmem>>, %arg4: memref<1x1x1xf32, #tpu.memory_space<vmem>>, %arg5: memref<1x1x1xf32, #tpu.memory_space<vmem>>) attributes {dimension_semantics = [#tpu.dimension_semantics<parallel>], iteration_bounds = array<i64: 1>, scalar_prefetch = 0 : i64, scratch_operands = 0 : i64, tpu.core_type = #tpu.core_type<tc>, window_params = [{transform_indices = @transform_0, window_bounds = array<i64: 8, 256>}, {pipeline_mode = #tpu.pipeline_mode<synchronous>, transform_indices = @transform_1, window_bounds = array<i64: 256, 256>}, {transform_indices = @transform_2, window_bounds = array<i64: 8, 256>}, {transform_indices = @transform_3, window_bounds = array<i64: 1, 1, 1>}, {transform_indices = @transform_4, window_bounds = array<i64: 1, 1, 1>}]} {
    %c0 = arith.constant 0 : index
    %c0_0 = arith.constant 0 : index
    %0 = vector.load %arg1[%c0, %c0_0] : memref<8x256xf32, #tpu.memory_space<vmem>>, vector<8x256xf32>
    %c0_1 = arith.constant 0 : index
    %c0_2 = arith.constant 0 : index
    %1 = vector.load %arg2[%c0_1, %c0_2] : memref<256x256xf32, #tpu.memory_space<vmem>>, vector<256x256xf32>
    %cst = arith.constant dense<0.000000e+00> : vector<8x256xf32>
    %2 = tpu.matmul %0, %1, %cst {dimension_numbers = #tpu.dot_dimension_numbers<[1], [0], [0], [1], [0, 0, 1, 1], [], []>, precision = #tpu.contract_precision<fp32>} : vector<8x256xf32>, vector<256x256xf32>, vector<8x256xf32> -> vector<8x256xf32>
    %3 = arith.subf %0, %2 : vector<8x256xf32>
    %4 = math.absf %3 : vector<8x256xf32>
    %c0_3 = arith.constant 0 : index
    %c0_4 = arith.constant 0 : index
    %5 = vector.load %arg3[%c0_3, %c0_4] : memref<8x256xf32, #tpu.memory_space<vmem>>, vector<8x256xf32>
    tpu.vector_store %arg3[%c0_3, %c0_4], %4 {strides = array<i32>} : memref<8x256xf32, #tpu.memory_space<vmem>>, vector<8x256xf32>,
    %cst_5 = arith.constant dense<0x7F800000> : vector<8xf32>
    %6 = vector.multi_reduction <minimumf>, %4, %cst_5 [1] : vector<8x256xf32> to vector<8xf32>
    %7 = vector.shape_cast %6 : vector<8xf32> to vector<8x1xf32>
    %cst_6 = arith.constant dense<0xFF800000> : vector<8xf32>
    %8 = vector.multi_reduction <maximumf>, %4, %cst_6 [1] : vector<8x256xf32> to vector<8xf32>
    %9 = vector.shape_cast %8 : vector<8xf32> to vector<8x1xf32>
    %cst_7 = arith.constant dense<0x7F800000> : vector<1xf32>
    %10 = vector.multi_reduction <minimumf>, %7, %cst_7 [0] : vector<8x1xf32> to vector<1xf32>
    %11 = vector.shape_cast %10 : vector<1xf32> to vector<1x1xf32>
    %c0_8 = arith.constant 0 : index
    %c0_9 = arith.constant 0 : index
    %c0_10 = arith.constant 0 : index
    %12 = vector.load %arg4[%c0_8, %c0_9, %c0_10] : memref<1x1x1xf32, #tpu.memory_space<vmem>>, vector<1x1x1xf32>
    %13 = vector.shape_cast %12 : vector<1x1x1xf32> to vector<1x1xf32>
    %14 = vector.shape_cast %11 : vector<1x1xf32> to vector<1x1x1xf32>
    tpu.vector_store %arg4[%c0_8, %c0_9, %c0_10], %14 {strides = array<i32>} : memref<1x1x1xf32, #tpu.memory_space<vmem>>, vector<1x1x1xf32>,
    %cst_11 = arith.constant dense<0xFF800000> : vector<1xf32>
    %15 = vector.multi_reduction <maximumf>, %9, %cst_11 [0] : vector<8x1xf32> to vector<1xf32>
    %16 = vector.shape_cast %15 : vector<1xf32> to vector<1x1xf32>
    %c0_12 = arith.constant 0 : index
    %c0_13 = arith.constant 0 : index
    %c0_14 = arith.constant 0 : index
    %17 = vector.load %arg5[%c0_12, %c0_13, %c0_14] : memref<1x1x1xf32, #tpu.memory_space<vmem>>, vector<1x1x1xf32>
    %18 = vector.shape_cast %17 : vector<1x1x1xf32> to vector<1x1xf32>
    %19 = vector.shape_cast %16 : vector<1x1xf32> to vector<1x1x1xf32>
    tpu.vector_store %arg5[%c0_12, %c0_13, %c0_14], %19 {strides = array<i32>} : memref<1x1x1xf32, #tpu.memory_space<vmem>>, vector<1x1x1xf32>,
    return
  }
  func.func @transform_0(%arg0: i32) -> (i32, i32) {
    %c0_i32 = arith.constant 0 : i32
    %c0_i32_0 = arith.constant 0 : i32
    return %arg0, %c0_i32 : i32, i32
  }
  func.func @transform_1(%arg0: i32) -> (i32, i32) {
    %c0_i32 = arith.constant 0 : i32
    %c0_i32_0 = arith.constant 0 : i32
    %c0_i32_1 = arith.constant 0 : i32
    return %c0_i32, %c0_i32_0 : i32, i32
  }
  func.func @transform_2(%arg0: i32) -> (i32, i32) {
    %c0_i32 = arith.constant 0 : i32
    %c0_i32_0 = arith.constant 0 : i32
    return %arg0, %c0_i32 : i32, i32
  }
  func.func @transform_3(%arg0: i32) -> (i32, i32, i32) {
    %c0_i32 = arith.constant 0 : i32
    %c0_i32_0 = arith.constant 0 : i32
    %c0_i32_1 = arith.constant 0 : i32
    return %arg0, %c0_i32, %c0_i32_0 : i32, i32, i32
  }
  func.func @transform_4(%arg0: i32) -> (i32, i32, i32) {
    %c0_i32 = arith.constant 0 : i32
    %c0_i32_0 = arith.constant 0 : i32
    %c0_i32_1 = arith.constant 0 : i32
    return %arg0, %c0_i32, %c0_i32_0 : i32, i32, i32
  }
}

</mosaic_0001>

<llo_original>
// kernel: tpu_custom_call.1
$region0: #{tpu_custom_call.1}
  #allocation0 [shape = 'u32[]', space=smem, size = 0x4, offset = 0x4, fixed_abs, tag = 'smem constant byte address 0x4 - core index']
  #allocation1 [shape = 'u32[72,128]{1,0:T(1,128)}', space=vmem, size = 0x9000, scoped, tag = 'internal scratch']
  %s0 = inlined_call_operand.hbm [shape: f32[8,256], index: 0, kind: input, shape index: {}]
  %s1 = inlined_call_operand.hbm [shape: f32[256,256], index: 1, kind: input, shape index: {}]
  %s2 = inlined_call_operand.hbm [shape: f32[8,256], index: 2, kind: output, shape index: {0}]
  %s3 = inlined_call_operand.hbm [shape: f32[1,1,1], index: 3, kind: output, shape index: {1}]
  %s4 = inlined_call_operand.hbm [shape: f32[1,1,1], index: 4, kind: output, shape index: {2}]
  %5 = xla_tuple %s2, %s3, %s4
  %s6 = sld [smem:[#allocation0]]
  $region42: #{tpu_custom_call.1} parent=0
    _
  %s8 = ssub.s32 1, %s6
  %s9 = scalar_select 0, %s8, %s6
  $region1: #{tpu_custom_call.1} parent=0
    #allocation2 [shape = 'u8[8192]{0}', space=vmem, size = 0x2000, scoped, tag = 'input window, operand 0, single buffered']
    #allocation3 [shape = 's32[1]{0}', space=sflag, size = 0x4, scoped, tag = 'scoped memory for tpu_custom_call.1']
    #allocation4 [shape = 's32[1]{0}', space=sflag, size = 0x4, scoped, tag = 'scoped memory for tpu_custom_call.1']
    #allocation5 [shape = 'u8[262144]{0}', space=vmem, size = 0x40000, scoped, tag = 'input window, operand 1, single buffered']
    #allocation6 [shape = 's32[1]{0}', space=sflag, size = 0x4, scoped, tag = 'scoped memory for tpu_custom_call.1']
    #allocation7 [shape = 'u8[8192]{0}', space=vmem, size = 0x2000, scoped, tag = 'output window, operand 0, single buffered']
    #allocation8 [shape = 'u8[512]{0}', space=vmem, size = 0x400, scoped, tag = 'output window, operand 1, single buffered']
    #allocation9 [shape = 's32[1]{0}', space=sflag, size = 0x4, scoped, tag = 'scoped memory for tpu_custom_call.1']
    #allocation10 [shape = 'u8[512]{0}', space=vmem, size = 0x400, scoped, tag = 'output window, operand 2, single buffered']
    %10 = vsyncpa [#allocation3], 0
    %11 = vsyncpa [#allocation6], 0
    %12 = vsyncpa [#allocation4], 0
    %13 = vsyncpa [#allocation9], 0
    // Predicated region
    $region2: #{tpu_custom_call.1} parent=1 // pred_check
      _
    $region3: #{tpu_custom_call.1} parent=1 // pred_check_branch
      %15 = sbr.rel (0) target = $region5
    $region4: #{tpu_custom_call.1} parent=1 // pred_region
      %17 = vsyncadd [#allocation3], 0
      %s19 = sshll.u32 %s0, 4
      %s20 = int_to_ptr.hbm [resolvable:$true] %s19
      %s21 = sshll.u32 [#allocation2], 4
      %s22 = int_to_ptr.vmem [resolvable:$true] %s21
      %24 = dma.hbm_to_vmem [thread:$0]  %s20, 256, %s22, [#allocation3]
    $region5: #{tpu_custom_call.1} parent=1 // pred_fallthru
      _
    // Predicated region
    $region6: #{tpu_custom_call.1} parent=1 // pred_check
      _
    $region7: #{tpu_custom_call.1} parent=1 // pred_check_branch
      %26 = sbr.rel (0) target = $region9
    $region8: #{tpu_custom_call.1} parent=1 // pred_region
      %28 = vsyncadd [#allocation6], 0
      %s29 = sshll.u32 %s1, 4
      %s30 = int_to_ptr.hbm [resolvable:$true] %s29
      %s31 = sshll.u32 [#allocation5], 4
      %s32 = int_to_ptr.vmem [resolvable:$true] %s31
      %37 = dma.hbm_to_vmem [thread:$0]  %s30, 8192, %s32, [#allocation6], 256, 256, 16
    $region9: #{tpu_custom_call.1} parent=1 // pred_fallthru
      _
    // Predicated region
    $region10: #{tpu_custom_call.1} parent=1 // pred_check
      _
    $region11: #{tpu_custom_call.1} parent=1 // pred_check_branch
      %39 = sbr.rel (0) target = $region13
    $region12: #{tpu_custom_call.1} parent=1 // pred_region
      %41 = dma.done [#allocation3], 256
    $region13: #{tpu_custom_call.1} parent=1 // pred_fallthru
      _
    // Predicated region
    $region14: #{tpu_custom_call.1} parent=1 // pred_check
      _
    $region15: #{tpu_custom_call.1} parent=1 // pred_check_branch
      %43 = sbr.rel (0) target = $region17
    $region16: #{tpu_custom_call.1} parent=1 // pred_region
      %45 = dma.done [#allocation6], 8192
    $region17: #{tpu_custom_call.1} parent=1 // pred_fallthru
      _
    %v46 = vld [vmem:[#allocation2] sm:$0xff]
    %v47 = vld [vmem:[#allocation2 + $0x8] sm:$0xff]
    %v48 = vld [vmem:[#allocation5] sm:$0xff]
    %v49 = vld [vmem:[#allocation5 + $0x8] sm:$0xff]
    %v50 = vld [vmem:[#allocation5 + $0x10] sm:$0xff]
    %v51 = vld [vmem:[#allocation5 + $0x18] sm:$0xff]
    %v52 = vld [vmem:[#allocation5 + $0x20] sm:$0xff]
    %v53 = vld [vmem:[#allocation5 + $0x28] sm:$0xff]
    %v54 = vld [vmem:[#allocation5 + $0x30] sm:$0xff]
    %v55 = vld [vmem:[#allocation5 + $0x38] sm:$0xff]
    %v56 = vld [vmem:[#allocation5 + $0x40] sm:$0xff]
    %v57 = vld [vmem:[#allocation5 + $0x48] sm:$0xff]
    %v58 = vld [vmem:[#allocation5 + $0x50] sm:$0xff]
    %v59 = vld [vmem:[#allocation5 + $0x58] sm:$0xff]
    %v60 = vld [vmem:[#allocation5 + $0x60] sm:$0xff]
    %v61 = vld [vmem:[#allocation5 + $0x68] sm:$0xff]
    %v62 = vld [vmem:[#allocation5 + $0x70] sm:$0xff]
    %v63 = vld [vmem:[#allocation5 + $0x78] sm:$0xff]
    %v64 = vld [vmem:[#allocation5 + $0x80] sm:$0xff]
    %v65 = vld [vmem:[#allocation5 + $0x88] sm:$0xff]
    %v66 = vld [vmem:[#allocation5 + $0x90] sm:$0xff]
    %v67 = vld [vmem:[#allocation5 + $0x98] sm:$0xff]
    %v68 = vld [vmem:[#allocation5 + $0xa0] sm:$0xff]
    %v69 = vld [vmem:[#allocation5 + $0xa8] sm:$0xff]
    %v70 = vld [vmem:[#allocation5 + $0xb0] sm:$0xff]
    %v71 = vld [vmem:[#allocation5 + $0xb8] sm:$0xff]
    %v72 = vld [vmem:[#allocation5 + $0xc0] sm:$0xff]
    %v73 = vld [vmem:[#allocation5 + $0xc8] sm:$0xff]
    %v74 = vld [vmem:[#allocation5 + $0xd0] sm:$0xff]
    %v75 = vld [vmem:[#allocation5 + $0xd8] sm:$0xff]
    %v76 = vld [vmem:[#allocation5 + $0xe0] sm:$0xff]
    %v77 = vld [vmem:[#allocation5 + $0xe8] sm:$0xff]
    %v78 = vld [vmem:[#allocation5 + $0xf0] sm:$0xff]
    %v79 = vld [vmem:[#allocation5 + $0xf8] sm:$0xff]
    %v80 = vld [vmem:[#allocation5 + $0x100] sm:$0xff]
    %v81 = vld [vmem:[#allocation5 + $0x108] sm:$0xff]
    %v82 = vld [vmem:[#allocation5 + $0x110] sm:$0xff]
    %v83 = vld [vmem:[#allocation5 + $0x118] sm:$0xff]
    %v84 = vld [vmem:[#allocation5 + $0x120] sm:$0xff]
    %v85 = vld [vmem:[#allocation5 + $0x128] sm:$0xff]
    %v86 = vld [vmem:[#allocation5 + $0x130] sm:$0xff]
    %v87 = vld [vmem:[#allocation5 + $0x138] sm:$0xff]
    %v88 = vld [vmem:[#allocation5 + $0x140] sm:$0xff]
    %v89 = vld [vmem:[#allocation5 + $0x148] sm:$0xff]
    %v90 = vld [vmem:[#allocation5 + $0x150] sm:$0xff]
    %v91 = vld [vmem:[#allocation5 + $0x158] sm:$0xff]
    %v92 = vld [vmem:[#allocation5 + $0x160] sm:$0xff]
    %v93 = vld [vmem:[#allocation5 + $0x168] sm:$0xff]
    %v94 = vld [vmem:[#allocation5 + $0x170] sm:$0xff]
    %v95 = vld [vmem:[#allocation5 + $0x178] sm:$0xff]
    %v96 = vld [vmem:[#allocation5 + $0x180] sm:$0xff]
    %v97 = vld [vmem:[#allocation5 + $0x188] sm:$0xff]
    %v98 = vld [vmem:[#allocation5 + $0x190] sm:$0xff]
    %v99 = vld [vmem:[#allocation5 + $0x198] sm:$0xff]
    %v100 = vld [vmem:[#allocation5 + $0x1a0] sm:$0xff]
    %v101 = vld [vmem:[#allocation5 + $0x1a8] sm:$0xff]
    %v102 = vld [vmem:[#allocation5 + $0x1b0] sm:$0xff]
    %v103 = vld [vmem:[#allocation5 + $0x1b8] sm:$0xff]
    %v104 = vld [vmem:[#allocation5 + $0x1c0] sm:$0xff]
    %v105 = vld [vmem:[#allocation5 + $0x1c8] sm:$0xff]
    %v106 = vld [vmem:[#allocation5 + $0x1d0] sm:$0xff]
    %v107 = vld [vmem:[#allocation5 + $0x1d8] sm:$0xff]
    %v108 = vld [vmem:[#allocation5 + $0x1e0] sm:$0xff]
    %v109 = vld [vmem:[#allocation5 + $0x1e8] sm:$0xff]
    %v110 = vld [vmem:[#allocation5 + $0x1f0] sm:$0xff]
    %v111 = vld [vmem:[#allocation5 + $0x1f8] sm:$0xff]
    %v112 = vand.u32 %v78, 4294901760
    %113 = vmatpush.msra.mxu0 %v112
    %v114 = vand.u32 %v76, 4294901760
    %115 = vmatpush.msra.mxu0 %v114
    %v116 = vand.u32 %v74, 4294901760
    %117 = vmatpush.msra.mxu0 %v116
    %v118 = vand.u32 %v72, 4294901760
    %119 = vmatpush.msra.mxu0 %v118
    %v120 = vand.u32 %v70, 4294901760
    %121 = vmatpush.msra.mxu0 %v120
    %v122 = vand.u32 %v68, 4294901760
    %123 = vmatpush.msra.mxu0 %v122
    %v124 = vand.u32 %v66, 4294901760
    %125 = vmatpush.msra.mxu0 %v124
    %v126 = vand.u32 %v64, 4294901760
    %127 = vmatpush.msra.mxu0 %v126
    %v128 = vand.u32 %v62, 4294901760
    %129 = vmatpush.msra.mxu0 %v128
    %v130 = vand.u32 %v60, 4294901760
    %131 = vmatpush.msra.mxu0 %v130
    %v132 = vand.u32 %v58, 4294901760
    %133 = vmatpush.msra.mxu0 %v132
    %v134 = vand.u32 %v56, 4294901760
    %135 = vmatpush.msra.mxu0 %v134
    %v136 = vand.u32 %v54, 4294901760
    %137 = vmatpush.msra.mxu0 %v136
    %v138 = vand.u32 %v52, 4294901760
    %139 = vmatpush.msra.mxu0 %v138
    %v140 = vand.u32 %v50, 4294901760
    %141 = vmatpush.msra.mxu0 %v140
    %v142 = vand.u32 %v48, 4294901760
    %143 = vmatpush.msra.mxu0 %v142
    %v144 = vand.u32 %v46, 4294901760
    %v145 = vsub.f32 %v46, %v144
    %v146 = vand.u32 %v145, 4294901760
    %v147 = vsub.f32 %v145, %v146
    %v148 = vand.u32 %v147, 4294901760
    %149 = vmatmul.f32.gmra.mxu0 %v148
    %v150 = vpop.f32.mrf.mxu0
    %v151 = vadd.f32 0.0, %v150
    %152 = vdwg.mxu0
    %v153 = vand.u32 %v78, 4294901760
    %v154 = vsub.f32 %v78, %v153
    %v155 = vand.u32 %v154, 4294901760
    %v156 = vsub.f32 %v154, %v155
    %v157 = vand.u32 %v156, 4294901760
    %158 = vmatpush.msra.mxu0 %v157
    %v159 = vand.u32 %v76, 4294901760
    %v160 = vsub.f32 %v76, %v159
    %v161 = vand.u32 %v160, 4294901760
    %v162 = vsub.f32 %v160, %v161
    %v163 = vand.u32 %v162, 4294901760
    %164 = vmatpush.msra.mxu0 %v163
    %v165 = vand.u32 %v74, 4294901760
    %v166 = vsub.f32 %v74, %v165
    %v167 = vand.u32 %v166, 4294901760
    %v168 = vsub.f32 %v166, %v167
    %v169 = vand.u32 %v168, 4294901760
    %170 = vmatpush.msra.mxu0 %v169
    %v171 = vand.u32 %v72, 4294901760
    %v172 = vsub.f32 %v72, %v171
    %v173 = vand.u32 %v172, 4294901760
    %v174 = vsub.f32 %v172, %v173
    %v175 = vand.u32 %v174, 4294901760
    %176 = vmatpush.msra.mxu0 %v175
    %v177 = vand.u32 %v70, 4294901760
    %v178 = vsub.f32 %v70, %v177
    %v179 = vand.u32 %v178, 4294901760
    %v180 = vsub.f32 %v178, %v179
    %v181 = vand.u32 %v180, 4294901760
    %182 = vmatpush.msra.mxu0 %v181
    %v183 = vand.u32 %v68, 4294901760
    %v184 = vsub.f32 %v68, %v183
    %v185 = vand.u32 %v184, 4294901760
    %v186 = vsub.f32 %v184, %v185
    %v187 = vand.u32 %v186, 4294901760
    %188 = vmatpush.msra.mxu0 %v187
    %v189 = vand.u32 %v66, 4294901760
    %v190 = vsub.f32 %v66, %v189
    %v191 = vand.u32 %v190, 4294901760
    %v192 = vsub.f32 %v190, %v191
    %v193 = vand.u32 %v192, 4294901760
    %194 = vmatpush.msra.mxu0 %v193
    %v195 = vand.u32 %v64, 4294901760
    %v196 = vsub.f32 %v64, %v195
    %v197 = vand.u32 %v196, 4294901760
    %v198 = vsub.f32 %v196, %v197
    %v199 = vand.u32 %v198, 4294901760
    %200 = vmatpush.msra.mxu0 %v199
    %v201 = vand.u32 %v62, 4294901760
    %v202 = vsub.f32 %v62, %v201
    %v203 = vand.u32 %v202, 4294901760
    %v204 = vsub.f32 %v202, %v203
    %v205 = vand.u32 %v204, 4294901760
    %206 = vmatpush.msra.mxu0 %v205
    %v207 = vand.u32 %v60, 4294901760
    %v208 = vsub.f32 %v60, %v207
    %v209 = vand.u32 %v208, 4294901760
    %v210 = vsub.f32 %v208, %v209
    %v211 = vand.u32 %v210, 4294901760
    %212 = vmatpush.msra.mxu0 %v211
    %v213 = vand.u32 %v58, 4294901760
    %v214 = vsub.f32 %v58, %v213
    %v215 = vand.u32 %v214, 4294901760
    %v216 = vsub.f32 %v214, %v215
    %v217 = vand.u32 %v216, 4294901760
    %218 = vmatpush.msra.mxu0 %v217
    %v219 = vand.u32 %v56, 4294901760
    %v220 = vsub.f32 %v56, %v219
    %v221 = vand.u32 %v220, 4294901760
    %v222 = vsub.f32 %v220, %v221
    %v223 = vand.u32 %v222, 4294901760
    %224 = vmatpush.msra.mxu0 %v223
    %v225 = vand.u32 %v54, 4294901760
    %v226 = vsub.f32 %v54, %v225
    %v227 = vand.u32 %v226, 4294901760
    %v228 = vsub.f32 %v226, %v227
    %v229 = vand.u32 %v228, 4294901760
    %230 = vmatpush.msra.mxu0 %v229
    %v231 = vand.u32 %v52, 4294901760
    %v232 = vsub.f32 %v52, %v231
    %v233 = vand.u32 %v232, 4294901760
    %v234 = vsub.f32 %v232, %v233
    %v235 = vand.u32 %v234, 4294901760
    %236 = vmatpush.msra.mxu0 %v235
    %v237 = vand.u32 %v50, 4294901760
    %v238 = vsub.f32 %v50, %v237
    %v239 = vand.u32 %v238, 4294901760
    %v240 = vsub.f32 %v238, %v239
    %v241 = vand.u32 %v240, 4294901760
    %242 = vmatpush.msra.mxu0 %v241
    %v243 = vand.u32 %v48, 4294901760
    %v244 = vsub.f32 %v48, %v243
    %v245 = vand.u32 %v244, 4294901760
    %v246 = vsub.f32 %v244, %v245
    %v247 = vand.u32 %v246, 4294901760
    %248 = vmatpush.msra.mxu0 %v247
    %v249 = vand.u32 %v46, 4294901760
    %250 = vmatmul.f32.gmra.mxu0 %v249
    %v251 = vpop.f32.mrf.mxu0
    %v252 = vadd.f32 %v151, %v251
    %253 = vdwg.mxu0
    %v254 = vand.u32 %v78, 4294901760
    %v255 = vsub.f32 %v78, %v254
    %256 = vmatpush.msra.mxu0 %v255
    %v257 = vand.u32 %v76, 4294901760
    %v258 = vsub.f32 %v76, %v257
    %259 = vmatpush.msra.mxu0 %v258
    %v260 = vand.u32 %v74, 4294901760
    %v261 = vsub.f32 %v74, %v260
    %262 = vmatpush.msra.mxu0 %v261
    %v263 = vand.u32 %v72, 4294901760
    %v264 = vsub.f32 %v72, %v263
    %265 = vmatpush.msra.mxu0 %v264
    %v266 = vand.u32 %v70, 4294901760
    %v267 = vsub.f32 %v70, %v266
    %268 = vmatpush.msra.mxu0 %v267
    %v269 = vand.u32 %v68, 4294901760
    %v270 = vsub.f32 %v68, %v269
    %271 = vmatpush.msra.mxu0 %v270
    %v272 = vand.u32 %v66, 4294901760
    %v273 = vsub.f32 %v66, %v272
    %274 = vmatpush.msra.mxu0 %v273
    %v275 = vand.u32 %v64, 4294901760
    %v276 = vsub.f32 %v64, %v275
    %277 = vmatpush.msra.mxu0 %v276
    %v278 = vand.u32 %v62, 4294901760
    %v279 = vsub.f32 %v62, %v278
    %280 = vmatpush.msra.mxu0 %v279
    %v281 = vand.u32 %v60, 4294901760
    %v282 = vsub.f32 %v60, %v281
    %283 = vmatpush.msra.mxu0 %v282
    %v284 = vand.u32 %v58, 4294901760
    %v285 = vsub.f32 %v58, %v284
    %286 = vmatpush.msra.mxu0 %v285
    %v287 = vand.u32 %v56, 4294901760
    %v288 = vsub.f32 %v56, %v287
    %289 = vmatpush.msra.mxu0 %v288
    %v290 = vand.u32 %v54, 4294901760
    %v291 = vsub.f32 %v54, %v290
    %292 = vmatpush.msra.mxu0 %v291
    %v293 = vand.u32 %v52, 4294901760
    %v294 = vsub.f32 %v52, %v293
    %295 = vmatpush.msra.mxu0 %v294
    %v296 = vand.u32 %v50, 4294901760
    %v297 = vsub.f32 %v50, %v296
    %298 = vmatpush.msra.mxu0 %v297
    %v299 = vand.u32 %v48, 4294901760
    %v300 = vsub.f32 %v48, %v299
    %301 = vmatpush.msra.mxu0 %v300
    %v302 = vand.u32 %v46, 4294901760
    %v303 = vsub.f32 %v46, %v302
    %304 = vmatmul.f32.gmra.mxu0 %v303
    %v305 = vpop.f32.mrf.mxu0
    %v306 = vadd.f32 %v252, %v305
    %307 = vdwg.mxu0
    %v308 = vand.u32 %v78, 4294901760
    %309 = vmatpush.msra.mxu0 %v308
    %v310 = vand.u32 %v76, 4294901760
    %311 = vmatpush.msra.mxu0 %v310
    %v312 = vand.u32 %v74, 4294901760
    %313 = vmatpush.msra.mxu0 %v312
    %v314 = vand.u32 %v72, 4294901760
    %315 = vmatpush.msra.mxu0 %v314
    %v316 = vand.u32 %v70, 4294901760
    %317 = vmatpush.msra.mxu0 %v316
    %v318 = vand.u32 %v68, 4294901760
    %319 = vmatpush.msra.mxu0 %v318
    %v320 = vand.u32 %v66, 4294901760
    %321 = vmatpush.msra.mxu0 %v320
    %v322 = vand.u32 %v64, 4294901760
    %323 = vmatpush.msra.mxu0 %v322
    %v324 = vand.u32 %v62, 4294901760
    %325 = vmatpush.msra.mxu0 %v324
    %v326 = vand.u32 %v60, 4294901760
    %327 = vmatpush.msra.mxu0 %v326
    %v328 = vand.u32 %v58, 4294901760
    %329 = vmatpush.msra.mxu0 %v328
    %v330 = vand.u32 %v56, 4294901760
    %331 = vmatpush.msra.mxu0 %v330
    %v332 = vand.u32 %v54, 4294901760
    %333 = vmatpush.msra.mxu0 %v332
    %v334 = vand.u32 %v52, 4294901760
    %335 = vmatpush.msra.mxu0 %v334
    %v336 = vand.u32 %v50, 4294901760
    %337 = vmatpush.msra.mxu0 %v336
    %v338 = vand.u32 %v48, 4294901760
    %339 = vmatpush.msra.mxu0 %v338
    %v340 = vand.u32 %v46, 4294901760
    %v341 = vsub.f32 %v46, %v340
    %v342 = vand.u32 %v341, 4294901760
    %343 = vmatmul.f32.gmra.mxu0 %v342
    %v344 = vpop.f32.mrf.mxu0
    %v345 = vadd.f32 %v306, %v344
    %346 = vdwg.mxu0
    %v347 = vand.u32 %v78, 4294901760
    %v348 = vsub.f32 %v78, %v347
    %v349 = vand.u32 %v348, 4294901760
    %350 = vmatpush.msra.mxu0 %v349
    %v351 = vand.u32 %v76, 4294901760
    %v352 = vsub.f32 %v76, %v351
    %v353 = vand.u32 %v352, 4294901760
    %354 = vmatpush.msra.mxu0 %v353
    %v355 = vand.u32 %v74, 4294901760
    %v356 = vsub.f32 %v74, %v355
    %v357 = vand.u32 %v356, 4294901760
    %358 = vmatpush.msra.mxu0 %v357
    %v359 = vand.u32 %v72, 4294901760
    %v360 = vsub.f32 %v72, %v359
    %v361 = vand.u32 %v360, 4294901760
    %362 = vmatpush.msra.mxu0 %v361
    %v363 = vand.u32 %v70, 4294901760
    %v364 = vsub.f32 %v70, %v363
    %v365 = vand.u32 %v364, 4294901760
    %366 = vmatpush.msra.mxu0 %v365
    %v367 = vand.u32 %v68, 4294901760
    %v368 = vsub.f32 %v68, %v367
    %v369 = vand.u32 %v368, 4294901760
    %370 = vmatpush.msra.mxu0 %v369
    %v371 = vand.u32 %v66, 4294901760
    %v372 = vsub.f32 %v66, %v371
    %v373 = vand.u32 %v372, 4294901760
    %374 = vmatpush.msra.mxu0 %v373
    %v375 = vand.u32 %v64, 4294901760
    %v376 = vsub.f32 %v64, %v375
    %v377 = vand.u32 %v376, 4294901760
    %378 = vmatpush.msra.mxu0 %v377
    %v379 = vand.u32 %v62, 4294901760
    %v380 = vsub.f32 %v62, %v379
    %v381 = vand.u32 %v380, 4294901760
    %382 = vmatpush.msra.mxu0 %v381
    %v383 = vand.u32 %v60, 4294901760
    %v384 = vsub.f32 %v60, %v383
    %v385 = vand.u32 %v384, 4294901760
    %386 = vmatpush.msra.mxu0 %v385
    %v387 = vand.u32 %v58, 4294901760
    %v388 = vsub.f32 %v58, %v387
    %v389 = vand.u32 %v388, 4294901760
    %390 = vmatpush.msra.mxu0 %v389
    %v391 = vand.u32 %v56, 4294901760
    %v392 = vsub.f32 %v56, %v391
    %v393 = vand.u32 %v392, 4294901760
    %394 = vmatpush.msra.mxu0 %v393
    %v395 = vand.u32 %v54, 4294901760
    %v396 = vsub.f32 %v54, %v395
    %v397 = vand.u32 %v396, 4294901760
    %398 = vmatpush.msra.mxu0 %v397
    %v399 = vand.u32 %v52, 4294901760
    %v400 = vsub.f32 %v52, %v399
    %v401 = vand.u32 %v400, 4294901760
    %402 = vmatpush.msra.mxu0 %v401
    %v403 = vand.u32 %v50, 4294901760
    %v404 = vsub.f32 %v50, %v403
    %v405 = vand.u32 %v404, 4294901760
    %406 = vmatpush.msra.mxu0 %v405
    %v407 = vand.u32 %v48, 4294901760
    %v408 = vsub.f32 %v48, %v407
    %v409 = vand.u32 %v408, 4294901760
    %410 = vmatpush.msra.mxu0 %v409
    %v411 = vand.u32 %v46, 4294901760
    %412 = vmatmul.f32.gmra.mxu0 %v411
    %v413 = vpop.f32.mrf.mxu0
    %v414 = vadd.f32 %v345, %v413
    %415 = vdwg.mxu0
    %v416 = vand.u32 %v78, 4294901760
    %417 = vmatpush.msra.mxu0 %v416
    %v418 = vand.u32 %v76, 4294901760
    %419 = vmatpush.msra.mxu0 %v418
    %v420 = vand.u32 %v74, 4294901760
    %421 = vmatpush.msra.mxu0 %v420
    %v422 = vand.u32 %v72, 4294901760
    %423 = vmatpush.msra.mxu0 %v422
    %v424 = vand.u32 %v70, 4294901760
    %425 = vmatpush.msra.mxu0 %v424
    %v426 = vand.u32 %v68, 4294901760
    %427 = vmatpush.msra.mxu0 %v426
    %v428 = vand.u32 %v66, 4294901760
    %429 = vmatpush.msra.mxu0 %v428
    %v430 = vand.u32 %v64, 4294901760
    %431 = vmatpush.msra.mxu0 %v430
    %v432 = vand.u32 %v62, 4294901760
    %433 = vmatpush.msra.mxu0 %v432
    %v434 = vand.u32 %v60, 4294901760
    %435 = vmatpush.msra.mxu0 %v434
    %v436 = vand.u32 %v58, 4294901760
    %437 = vmatpush.msra.mxu0 %v436
    %v438 = vand.u32 %v56, 4294901760
    %439 = vmatpush.msra.mxu0 %v438
    %v440 = vand.u32 %v54, 4294901760
    %441 = vmatpush.msra.mxu0 %v440
    %v442 = vand.u32 %v52, 4294901760
    %443 = vmatpush.msra.mxu0 %v442
    %v444 = vand.u32 %v50, 4294901760
    %445 = vmatpush.msra.mxu0 %v444
    %v446 = vand.u32 %v48, 4294901760
    %447 = vmatpush.msra.mxu0 %v446
    %v448 = vand.u32 %v46, 4294901760
    %449 = vmatmul.f32.gmra.mxu0 %v448
    %v450 = vpop.f32.mrf.mxu0
    %v451 = vadd.f32 %v414, %v450
    %452 = vdwg.mxu0
    %v453 = vand.u32 %v110, 4294901760
    %454 = vmatpush.msra.mxu0 %v453
    %v455 = vand.u32 %v108, 4294901760
    %456 = vmatpush.msra.mxu0 %v455
    %v457 = vand.u32 %v106, 4294901760
    %458 = vmatpush.msra.mxu0 %v457
    %v459 = vand.u32 %v104, 4294901760
    %460 = vmatpush.msra.mxu0 %v459
    %v461 = vand.u32 %v102, 4294901760
    %462 = vmatpush.msra.mxu0 %v461
    %v463 = vand.u32 %v100, 4294901760
    %464 = vmatpush.msra.mxu0 %v463
    %v465 = vand.u32 %v98, 4294901760
    %466 = vmatpush.msra.mxu0 %v465
    %v467 = vand.u32 %v96, 4294901760
    %468 = vmatpush.msra.mxu0 %v467
    %v469 = vand.u32 %v94, 4294901760
    %470 = vmatpush.msra.mxu0 %v469
    %v471 = vand.u32 %v92, 4294901760
    %472 = vmatpush.msra.mxu0 %v471
    %v473 = vand.u32 %v90, 4294901760
    %474 = vmatpush.msra.mxu0 %v473
    %v475 = vand.u32 %v88, 4294901760
    %476 = vmatpush.msra.mxu0 %v475
    %v477 = vand.u32 %v86, 4294901760
    %478 = vmatpush.msra.mxu0 %v477
    %v479 = vand.u32 %v84, 4294901760
    %480 = vmatpush.msra.mxu0 %v479
    %v481 = vand.u32 %v82, 4294901760
    %482 = vmatpush.msra.mxu0 %v481
    %v483 = vand.u32 %v80, 4294901760
    %484 = vmatpush.msra.mxu0 %v483
    %v485 = vand.u32 %v47, 4294901760
    %v486 = vsub.f32 %v47, %v485
    %v487 = vand.u32 %v486, 4294901760
    %v488 = vsub.f32 %v486, %v487
    %v489 = vand.u32 %v488, 4294901760
    %490 = vmatmul.f32.gmra.mxu0 %v489
    %v491 = vpop.f32.mrf.mxu0
    %v492 = vadd.f32 %v451, %v491
    %493 = vdwg.mxu0
    %v494 = vand.u32 %v110, 4294901760
    %v495 = vsub.f32 %v110, %v494
    %v496 = vand.u32 %v495, 4294901760
    %v497 = vsub.f32 %v495, %v496
    %v498 = vand.u32 %v497, 4294901760
    %499 = vmatpush.msra.mxu0 %v498
    %v500 = vand.u32 %v108, 4294901760
    %v501 = vsub.f32 %v108, %v500
    %v502 = vand.u32 %v501, 4294901760
    %v503 = vsub.f32 %v501, %v502
    %v504 = vand.u32 %v503, 4294901760
    %505 = vmatpush.msra.mxu0 %v504
    %v506 = vand.u32 %v106, 4294901760
    %v507 = vsub.f32 %v106, %v506
    %v508 = vand.u32 %v507, 4294901760
    %v509 = vsub.f32 %v507, %v508
    %v510 = vand.u32 %v509, 4294901760
    %511 = vmatpush.msra.mxu0 %v510
    %v512 = vand.u32 %v104, 4294901760
    %v513 = vsub.f32 %v104, %v512
    %v514 = vand.u32 %v513, 4294901760
    %v515 = vsub.f32 %v513, %v514
    %v516 = vand.u32 %v515, 4294901760
    %517 = vmatpush.msra.mxu0 %v516
    %v518 = vand.u32 %v102, 4294901760
    %v519 = vsub.f32 %v102, %v518
    %v520 = vand.u32 %v519, 4294901760
    %v521 = vsub.f32 %v519, %v520
    %v522 = vand.u32 %v521, 4294901760
    %523 = vmatpush.msra.mxu0 %v522
    %v524 = vand.u32 %v100, 4294901760
    %v525 = vsub.f32 %v100, %v524
    %v526 = vand.u32 %v525, 4294901760
    %v527 = vsub.f32 %v525, %v526
    %v528 = vand.u32 %v527, 4294901760
    %529 = vmatpush.msra.mxu0 %v528
    %v530 = vand.u32 %v98, 4294901760
    %v531 = vsub.f32 %v98, %v530
    %v532 = vand.u32 %v531, 4294901760
    %v533 = vsub.f32 %v531, %v532
    %v534 = vand.u32 %v533, 4294901760
    %535 = vmatpush.msra.mxu0 %v534
    %v536 = vand.u32 %v96, 4294901760
    %v537 = vsub.f32 %v96, %v536
    %v538 = vand.u32 %v537, 4294901760
    %v539 = vsub.f32 %v537, %v538
    %v540 = vand.u32 %v539, 4294901760
    %541 = vmatpush.msra.mxu0 %v540
    %v542 = vand.u32 %v94, 4294901760
    %v543 = vsub.f32 %v94, %v542
    %v544 = vand.u32 %v543, 4294901760
    %v545 = vsub.f32 %v543, %v544
    %v546 = vand.u32 %v545, 4294901760
    %547 = vmatpush.msra.mxu0 %v546
    %v548 = vand.u32 %v92, 4294901760
    %v549 = vsub.f32 %v92, %v548
    %v550 = vand.u32 %v549, 4294901760
    %v551 = vsub.f32 %v549, %v550
    %v552 = vand.u32 %v551, 4294901760
    %553 = vmatpush.msra.mxu0 %v552
    %v554 = vand.u32 %v90, 4294901760
    %v555 = vsub.f32 %v90, %v554
    %v556 = vand.u32 %v555, 4294901760
    %v557 = vsub.f32 %v555, %v556
    %v558 = vand.u32 %v557, 4294901760
    %559 = vmatpush.msra.mxu0 %v558
    %v560 = vand.u32 %v88, 4294901760
    %v561 = vsub.f32 %v88, %v560
    %v562 = vand.u32 %v561, 4294901760
    %v563 = vsub.f32 %v561, %v562
    %v564 = vand.u32 %v563, 4294901760
    %565 = vmatpush.msra.mxu0 %v564
    %v566 = vand.u32 %v86, 4294901760
    %v567 = vsub.f32 %v86, %v566
    %v568 = vand.u32 %v567, 4294901760
    %v569 = vsub.f32 %v567, %v568
    %v570 = vand.u32 %v569, 4294901760
    %571 = vmatpush.msra.mxu0 %v570
    %v572 = vand.u32 %v84, 4294901760
    %v573 = vsub.f32 %v84, %v572
    %v574 = vand.u32 %v573, 4294901760
    %v575 = vsub.f32 %v573, %v574
    %v576 = vand.u32 %v575, 4294901760
    %577 = vmatpush.msra.mxu0 %v576
    %v578 = vand.u32 %v82, 4294901760
    %v579 = vsub.f32 %v82, %v578
    %v580 = vand.u32 %v579, 4294901760
    %v581 = vsub.f32 %v579, %v580
    %v582 = vand.u32 %v581, 4294901760
    %583 = vmatpush.msra.mxu0 %v582
    %v584 = vand.u32 %v80, 4294901760
    %v585 = vsub.f32 %v80, %v584
    %v586 = vand.u32 %v585, 4294901760
    %v587 = vsub.f32 %v585, %v586
    %v588 = vand.u32 %v587, 4294901760
    %589 = vmatpush.msra.mxu0 %v588
    %v590 = vand.u32 %v47, 4294901760
    %591 = vmatmul.f32.gmra.mxu0 %v590
    %v592 = vpop.f32.mrf.mxu0
    %v593 = vadd.f32 %v492, %v592
    %594 = vdwg.mxu0
    %v595 = vand.u32 %v110, 4294901760
    %v596 = vsub.f32 %v110, %v595
    %597 = vmatpush.msra.mxu0 %v596
    %v598 = vand.u32 %v108, 4294901760
    %v599 = vsub.f32 %v108, %v598
    %600 = vmatpush.msra.mxu0 %v599
    %v601 = vand.u32 %v106, 4294901760
    %v602 = vsub.f32 %v106, %v601
    %603 = vmatpush.msra.mxu0 %v602
    %v604 = vand.u32 %v104, 4294901760
    %v605 = vsub.f32 %v104, %v604
    %606 = vmatpush.msra.mxu0 %v605
    %v607 = vand.u32 %v102, 4294901760
    %v608 = vsub.f32 %v102, %v607
    %609 = vmatpush.msra.mxu0 %v608
    %v610 = vand.u32 %v100, 4294901760
    %v611 = vsub.f32 %v100, %v610
    %612 = vmatpush.msra.mxu0 %v611
    %v613 = vand.u32 %v98, 4294901760
    %v614 = vsub.f32 %v98, %v613
    %615 = vmatpush.msra.mxu0 %v614
    %v616 = vand.u32 %v96, 4294901760
    %v617 = vsub.f32 %v96, %v616
    %618 = vmatpush.msra.mxu0 %v617
    %v619 = vand.u32 %v94, 4294901760
    %v620 = vsub.f32 %v94, %v619
    %621 = vmatpush.msra.mxu0 %v620
    %v622 = vand.u32 %v92, 4294901760
    %v623 = vsub.f32 %v92, %v622
    %624 = vmatpush.msra.mxu0 %v623
    %v625 = vand.u32 %v90, 4294901760
    %v626 = vsub.f32 %v90, %v625
    %627 = vmatpush.msra.mxu0 %v626
    %v628 = vand.u32 %v88, 4294901760
    %v629 = vsub.f32 %v88, %v628
    %630 = vmatpush.msra.mxu0 %v629
    %v631 = vand.u32 %v86, 4294901760
    %v632 = vsub.f32 %v86, %v631
    %633 = vmatpush.msra.mxu0 %v632
    %v634 = vand.u32 %v84, 4294901760
    %v635 = vsub.f32 %v84, %v634
    %636 = vmatpush.msra.mxu0 %v635
    %v637 = vand.u32 %v82, 4294901760
    %v638 = vsub.f32 %v82, %v637
    %639 = vmatpush.msra.mxu0 %v638
    %v640 = vand.u32 %v80, 4294901760
    %v641 = vsub.f32 %v80, %v640
    %642 = vmatpush.msra.mxu0 %v641
    %v643 = vand.u32 %v47, 4294901760
    %v644 = vsub.f32 %v47, %v643
    %645 = vmatmul.f32.gmra.mxu0 %v644
    %v646 = vpop.f32.mrf.mxu0
    %v647 = vadd.f32 %v593, %v646
    %648 = vdwg.mxu0
    %v649 = vand.u32 %v110, 4294901760
    %650 = vmatpush.msra.mxu0 %v649
    %v651 = vand.u32 %v108, 4294901760
    %652 = vmatpush.msra.mxu0 %v651
    %v653 = vand.u32 %v106, 4294901760
    %654 = vmatpush.msra.mxu0 %v653
    %v655 = vand.u32 %v104, 4294901760
    %656 = vmatpush.msra.mxu0 %v655
    %v657 = vand.u32 %v102, 4294901760
    %658 = vmatpush.msra.mxu0 %v657
    %v659 = vand.u32 %v100, 4294901760
    %660 = vmatpush.msra.mxu0 %v659
    %v661 = vand.u32 %v98, 4294901760
    %662 = vmatpush.msra.mxu0 %v661
    %v663 = vand.u32 %v96, 4294901760
    %664 = vmatpush.msra.mxu0 %v663
    %v665 = vand.u32 %v94, 4294901760
    %666 = vmatpush.msra.mxu0 %v665
    %v667 = vand.u32 %v92, 4294901760
    %668 = vmatpush.msra.mxu0 %v667
    %v669 = vand.u32 %v90, 4294901760
    %670 = vmatpush.msra.mxu0 %v669
    %v671 = vand.u32 %v88, 4294901760
    %672 = vmatpush.msra.mxu0 %v671
    %v673 = vand.u32 %v86, 4294901760
    %674 = vmatpush.msra.mxu0 %v673
    %v675 = vand.u32 %v84, 4294901760
    %676 = vmatpush.msra.mxu0 %v675
    %v677 = vand.u32 %v82, 4294901760
    %678 = vmatpush.msra.mxu0 %v677
    %v679 = vand.u32 %v80, 4294901760
    %680 = vmatpush.msra.mxu0 %v679
    %v681 = vand.u32 %v47, 4294901760
    %v682 = vsub.f32 %v47, %v681
    %v683 = vand.u32 %v682, 4294901760
    %684 = vmatmul.f32.gmra.mxu0 %v683
    %v685 = vpop.f32.mrf.mxu0
    %v686 = vadd.f32 %v647, %v685
    %687 = vdwg.mxu0
    %v688 = vand.u32 %v110, 4294901760
    %v689 = vsub.f32 %v110, %v688
    %v690 = vand.u32 %v689, 4294901760
    %691 = vmatpush.msra.mxu0 %v690
    %v692 = vand.u32 %v108, 4294901760
    %v693 = vsub.f32 %v108, %v692
    %v694 = vand.u32 %v693, 4294901760
    %695 = vmatpush.msra.mxu0 %v694
    %v696 = vand.u32 %v106, 4294901760
    %v697 = vsub.f32 %v106, %v696
    %v698 = vand.u32 %v697, 4294901760
    %699 = vmatpush.msra.mxu0 %v698
    %v700 = vand.u32 %v104, 4294901760
    %v701 = vsub.f32 %v104, %v700
    %v702 = vand.u32 %v701, 4294901760
    %703 = vmatpush.msra.mxu0 %v702
    %v704 = vand.u32 %v102, 4294901760
    %v705 = vsub.f32 %v102, %v704
    %v706 = vand.u32 %v705, 4294901760
    %707 = vmatpush.msra.mxu0 %v706
    %v708 = vand.u32 %v100, 4294901760
    %v709 = vsub.f32 %v100, %v708
    %v710 = vand.u32 %v709, 4294901760
    %711 = vmatpush.msra.mxu0 %v710
    %v712 = vand.u32 %v98, 4294901760
    %v713 = vsub.f32 %v98, %v712
    %v714 = vand.u32 %v713, 4294901760
    %715 = vmatpush.msra.mxu0 %v714
    %v716 = vand.u32 %v96, 4294901760
    %v717 = vsub.f32 %v96, %v716
    %v718 = vand.u32 %v717, 4294901760
    %719 = vmatpush.msra.mxu0 %v718
    %v720 = vand.u32 %v94, 4294901760
    %v721 = vsub.f32 %v94, %v720
    %v722 = vand.u32 %v721, 4294901760
    %723 = vmatpush.msra.mxu0 %v722
    %v724 = vand.u32 %v92, 4294901760
    %v725 = vsub.f32 %v92, %v724
    %v726 = vand.u32 %v725, 4294901760
    %727 = vmatpush.msra.mxu0 %v726
    %v728 = vand.u32 %v90, 4294901760
    %v729 = vsub.f32 %v90, %v728
    %v730 = vand.u32 %v729, 4294901760
    %731 = vmatpush.msra.mxu0 %v730
    %v732 = vand.u32 %v88, 4294901760
    %v733 = vsub.f32 %v88, %v732
    %v734 = vand.u32 %v733, 4294901760
    %735 = vmatpush.msra.mxu0 %v734
    %v736 = vand.u32 %v86, 4294901760
    %v737 = vsub.f32 %v86, %v736
    %v738 = vand.u32 %v737, 4294901760
    %739 = vmatpush.msra.mxu0 %v738
    %v740 = vand.u32 %v84, 4294901760
    %v741 = vsub.f32 %v84, %v740
    %v742 = vand.u32 %v741, 4294901760
    %743 = vmatpush.msra.mxu0 %v742
    %v744 = vand.u32 %v82, 4294901760
    %v745 = vsub.f32 %v82, %v744
    %v746 = vand.u32 %v745, 4294901760
    %747 = vmatpush.msra.mxu0 %v746
    %v748 = vand.u32 %v80, 4294901760
    %v749 = vsub.f32 %v80, %v748
    %v750 = vand.u32 %v749, 4294901760
    %751 = vmatpush.msra.mxu0 %v750
    %v752 = vand.u32 %v47, 4294901760
    %753 = vmatmul.f32.gmra.mxu0 %v752
    %v754 = vpop.f32.mrf.mxu0
    %v755 = vadd.f32 %v686, %v754
    %756 = vdwg.mxu0
    %v757 = vand.u32 %v110, 4294901760
    %758 = vmatpush.msra.mxu0 %v757
    %v759 = vand.u32 %v108, 4294901760
    %760 = vmatpush.msra.mxu0 %v759
    %v761 = vand.u32 %v106, 4294901760
    %762 = vmatpush.msra.mxu0 %v761
    %v763 = vand.u32 %v104, 4294901760
    %764 = vmatpush.msra.mxu0 %v763
    %v765 = vand.u32 %v102, 4294901760
    %766 = vmatpush.msra.mxu0 %v765
    %v767 = vand.u32 %v100, 4294901760
    %768 = vmatpush.msra.mxu0 %v767
    %v769 = vand.u32 %v98, 4294901760
    %770 = vmatpush.msra.mxu0 %v769
    %v771 = vand.u32 %v96, 4294901760
    %772 = vmatpush.msra.mxu0 %v771
    %v773 = vand.u32 %v94, 4294901760
    %774 = vmatpush.msra.mxu0 %v773
    %v775 = vand.u32 %v92, 4294901760
    %776 = vmatpush.msra.mxu0 %v775
    %v777 = vand.u32 %v90, 4294901760
    %778 = vmatpush.msra.mxu0 %v777
    %v779 = vand.u32 %v88, 4294901760
    %780 = vmatpush.msra.mxu0 %v779
    %v781 = vand.u32 %v86, 4294901760
    %782 = vmatpush.msra.mxu0 %v781
    %v783 = vand.u32 %v84, 4294901760
    %784 = vmatpush.msra.mxu0 %v783
    %v785 = vand.u32 %v82, 4294901760
    %786 = vmatpush.msra.mxu0 %v785
    %v787 = vand.u32 %v80, 4294901760
    %788 = vmatpush.msra.mxu0 %v787
    %v789 = vand.u32 %v47, 4294901760
    %790 = vmatmul.f32.gmra.mxu0 %v789
    %v791 = vpop.f32.mrf.mxu0
    %v792 = vadd.f32 %v755, %v791
    %793 = vdwg.mxu0
    %v794 = vand.u32 %v79, 4294901760
    %795 = vmatpush.msra.mxu0 %v794
    %v796 = vand.u32 %v77, 4294901760
    %797 = vmatpush.msra.mxu0 %v796
    %v798 = vand.u32 %v75, 4294901760
    %799 = vmatpush.msra.mxu0 %v798
    %v800 = vand.u32 %v73, 4294901760
    %801 = vmatpush.msra.mxu0 %v800
    %v802 = vand.u32 %v71, 4294901760
    %803 = vmatpush.msra.mxu0 %v802
    %v804 = vand.u32 %v69, 4294901760
    %805 = vmatpush.msra.mxu0 %v804
    %v806 = vand.u32 %v67, 4294901760
    %807 = vmatpush.msra.mxu0 %v806
    %v808 = vand.u32 %v65, 4294901760
    %809 = vmatpush.msra.mxu0 %v808
    %v810 = vand.u32 %v63, 4294901760
    %811 = vmatpush.msra.mxu0 %v810
    %v812 = vand.u32 %v61, 4294901760
    %813 = vmatpush.msra.mxu0 %v812
    %v814 = vand.u32 %v59, 4294901760
    %815 = vmatpush.msra.mxu0 %v814
    %v816 = vand.u32 %v57, 4294901760
    %817 = vmatpush.msra.mxu0 %v816
    %v818 = vand.u32 %v55, 4294901760
    %819 = vmatpush.msra.mxu0 %v818
    %v820 = vand.u32 %v53, 4294901760
    %821 = vmatpush.msra.mxu0 %v820
    %v822 = vand.u32 %v51, 4294901760
    %823 = vmatpush.msra.mxu0 %v822
    %v824 = vand.u32 %v49, 4294901760
    %825 = vmatpush.msra.mxu0 %v824
    %v826 = vand.u32 %v46, 4294901760
    %v827 = vsub.f32 %v46, %v826
    %v828 = vand.u32 %v827, 4294901760
    %v829 = vsub.f32 %v827, %v828
    %v830 = vand.u32 %v829, 4294901760
    %831 = vmatmul.f32.gmra.mxu0 %v830
    %v832 = vpop.f32.mrf.mxu0
    %v833 = vadd.f32 0.0, %v832
    %834 = vdwg.mxu0
    %v835 = vand.u32 %v79, 4294901760
    %v836 = vsub.f32 %v79, %v835
    %v837 = vand.u32 %v836, 4294901760
    %v838 = vsub.f32 %v836, %v837
    %v839 = vand.u32 %v838, 4294901760
    %840 = vmatpush.msra.mxu0 %v839
    %v841 = vand.u32 %v77, 4294901760
    %v842 = vsub.f32 %v77, %v841
    %v843 = vand.u32 %v842, 4294901760
    %v844 = vsub.f32 %v842, %v843
    %v845 = vand.u32 %v844, 4294901760
    %846 = vmatpush.msra.mxu0 %v845
    %v847 = vand.u32 %v75, 4294901760
    %v848 = vsub.f32 %v75, %v847
    %v849 = vand.u32 %v848, 4294901760
    %v850 = vsub.f32 %v848, %v849
    %v851 = vand.u32 %v850, 4294901760
    %852 = vmatpush.msra.mxu0 %v851
    %v853 = vand.u32 %v73, 4294901760
    %v854 = vsub.f32 %v73, %v853
    %v855 = vand.u32 %v854, 4294901760
    %v856 = vsub.f32 %v854, %v855
    %v857 = vand.u32 %v856, 4294901760
    %858 = vmatpush.msra.mxu0 %v857
    %v859 = vand.u32 %v71, 4294901760
    %v860 = vsub.f32 %v71, %v859
    %v861 = vand.u32 %v860, 4294901760
    %v862 = vsub.f32 %v860, %v861
    %v863 = vand.u32 %v862, 4294901760
    %864 = vmatpush.msra.mxu0 %v863
    %v865 = vand.u32 %v69, 4294901760
    %v866 = vsub.f32 %v69, %v865
    %v867 = vand.u32 %v866, 4294901760
    %v868 = vsub.f32 %v866, %v867
    %v869 = vand.u32 %v868, 4294901760
    %870 = vmatpush.msra.mxu0 %v869
    %v871 = vand.u32 %v67, 4294901760
    %v872 = vsub.f32 %v67, %v871
    %v873 = vand.u32 %v872, 4294901760
    %v874 = vsub.f32 %v872, %v873
    %v875 = vand.u32 %v874, 4294901760
    %876 = vmatpush.msra.mxu0 %v875
    %v877 = vand.u32 %v65, 4294901760
    %v878 = vsub.f32 %v65, %v877
    %v879 = vand.u32 %v878, 4294901760
    %v880 = vsub.f32 %v878, %v879
    %v881 = vand.u32 %v880, 4294901760
    %882 = vmatpush.msra.mxu0 %v881
    %v883 = vand.u32 %v63, 4294901760
    %v884 = vsub.f32 %v63, %v883
    %v885 = vand.u32 %v884, 4294901760
    %v886 = vsub.f32 %v884, %v885
    %v887 = vand.u32 %v886, 4294901760
    %888 = vmatpush.msra.mxu0 %v887
    %v889 = vand.u32 %v61, 4294901760
    %v890 = vsub.f32 %v61, %v889
    %v891 = vand.u32 %v890, 4294901760
    %v892 = vsub.f32 %v890, %v891
    %v893 = vand.u32 %v892, 4294901760
    %894 = vmatpush.msra.mxu0 %v893
    %v895 = vand.u32 %v59, 4294901760
    %v896 = vsub.f32 %v59, %v895
    %v897 = vand.u32 %v896, 4294901760
    %v898 = vsub.f32 %v896, %v897
    %v899 = vand.u32 %v898, 4294901760
    %900 = vmatpush.msra.mxu0 %v899
    %v901 = vand.u32 %v57, 4294901760
    %v902 = vsub.f32 %v57, %v901
    %v903 = vand.u32 %v902, 4294901760
    %v904 = vsub.f32 %v902, %v903
    %v905 = vand.u32 %v904, 4294901760
    %906 = vmatpush.msra.mxu0 %v905
    %v907 = vand.u32 %v55, 4294901760
    %v908 = vsub.f32 %v55, %v907
    %v909 = vand.u32 %v908, 4294901760
    %v910 = vsub.f32 %v908, %v909
    %v911 = vand.u32 %v910, 4294901760
    %912 = vmatpush.msra.mxu0 %v911
    %v913 = vand.u32 %v53, 4294901760
    %v914 = vsub.f32 %v53, %v913
    %v915 = vand.u32 %v914, 4294901760
    %v916 = vsub.f32 %v914, %v915
    %v917 = vand.u32 %v916, 4294901760
    %918 = vmatpush.msra.mxu0 %v917
    %v919 = vand.u32 %v51, 4294901760
    %v920 = vsub.f32 %v51, %v919
    %v921 = vand.u32 %v920, 4294901760
    %v922 = vsub.f32 %v920, %v921
    %v923 = vand.u32 %v922, 4294901760
    %924 = vmatpush.msra.mxu0 %v923
    %v925 = vand.u32 %v49, 4294901760
    %v926 = vsub.f32 %v49, %v925
    %v927 = vand.u32 %v926, 4294901760
    %v928 = vsub.f32 %v926, %v927
    %v929 = vand.u32 %v928, 4294901760
    %930 = vmatpush.msra.mxu0 %v929
    %v931 = vand.u32 %v46, 4294901760
    %932 = vmatmul.f32.gmra.mxu0 %v931
    %v933 = vpop.f32.mrf.mxu0
    %v934 = vadd.f32 %v833, %v933
    %935 = vdwg.mxu0
    %v936 = vand.u32 %v79, 4294901760
    %v937 = vsub.f32 %v79, %v936
    %938 = vmatpush.msra.mxu0 %v937
    %v939 = vand.u32 %v77, 4294901760
    %v940 = vsub.f32 %v77, %v939
    %941 = vmatpush.msra.mxu0 %v940
    %v942 = vand.u32 %v75, 4294901760
    %v943 = vsub.f32 %v75, %v942
    %944 = vmatpush.msra.mxu0 %v943
    %v945 = vand.u32 %v73, 4294901760
    %v946 = vsub.f32 %v73, %v945
    %947 = vmatpush.msra.mxu0 %v946
    %v948 = vand.u32 %v71, 4294901760
    %v949 = vsub.f32 %v71, %v948
    %950 = vmatpush.msra.mxu0 %v949
    %v951 = vand.u32 %v69, 4294901760
    %v952 = vsub.f32 %v69, %v951
    %953 = vmatpush.msra.mxu0 %v952
    %v954 = vand.u32 %v67, 4294901760
    %v955 = vsub.f32 %v67, %v954
    %956 = vmatpush.msra.mxu0 %v955
    %v957 = vand.u32 %v65, 4294901760
    %v958 = vsub.f32 %v65, %v957
    %959 = vmatpush.msra.mxu0 %v958
    %v960 = vand.u32 %v63, 4294901760
    %v961 = vsub.f32 %v63, %v960
    %962 = vmatpush.msra.mxu0 %v961
    %v963 = vand.u32 %v61, 4294901760
    %v964 = vsub.f32 %v61, %v963
    %965 = vmatpush.msra.mxu0 %v964
    %v966 = vand.u32 %v59, 4294901760
    %v967 = vsub.f32 %v59, %v966
    %968 = vmatpush.msra.mxu0 %v967
    %v969 = vand.u32 %v57, 4294901760
    %v970 = vsub.f32 %v57, %v969
    %971 = vmatpush.msra.mxu0 %v970
    %v972 = vand.u32 %v55, 4294901760
    %v973 = vsub.f32 %v55, %v972
    %974 = vmatpush.msra.mxu0 %v973
    %v975 = vand.u32 %v53, 4294901760
    %v976 = vsub.f32 %v53, %v975
    %977 = vmatpush.msra.mxu0 %v976
    %v978 = vand.u32 %v51, 4294901760
    %v979 = vsub.f32 %v51, %v978
    %980 = vmatpush.msra.mxu0 %v979
    %v981 = vand.u32 %v49, 4294901760
    %v982 = vsub.f32 %v49, %v981
    %983 = vmatpush.msra.mxu0 %v982
    %v984 = vand.u32 %v46, 4294901760
    %v985 = vsub.f32 %v46, %v984
    %986 = vmatmul.f32.gmra.mxu0 %v985
    %v987 = vpop.f32.mrf.mxu0
    %v988 = vadd.f32 %v934, %v987
    %989 = vdwg.mxu0
    %v990 = vand.u32 %v79, 4294901760
    %991 = vmatpush.msra.mxu0 %v990
    %v992 = vand.u32 %v77, 4294901760
    %993 = vmatpush.msra.mxu0 %v992
    %v994 = vand.u32 %v75, 4294901760
    %995 = vmatpush.msra.mxu0 %v994
    %v996 = vand.u32 %v73, 4294901760
    %997 = vmatpush.msra.mxu0 %v996
    %v998 = vand.u32 %v71, 4294901760
    %999 = vmatpush.msra.mxu0 %v998
    %v1000 = vand.u32 %v69, 4294901760
    %1001 = vmatpush.msra.mxu0 %v1000
    %v1002 = vand.u32 %v67, 4294901760
    %1003 = vmatpush.msra.mxu0 %v1002
    %v1004 = vand.u32 %v65, 4294901760
    %1005 = vmatpush.msra.mxu0 %v1004
    %v1006 = vand.u32 %v63, 4294901760
    %1007 = vmatpush.msra.mxu0 %v1006
    %v1008 = vand.u32 %v61, 4294901760
    %1009 = vmatpush.msra.mxu0 %v1008
    %v1010 = vand.u32 %v59, 4294901760
    %1011 = vmatpush.msra.mxu0 %v1010
    %v1012 = vand.u32 %v57, 4294901760
    %1013 = vmatpush.msra.mxu0 %v1012
    %v1014 = vand.u32 %v55, 4294901760
    %1015 = vmatpush.msra.mxu0 %v1014
    %v1016 = vand.u32 %v53, 4294901760
    %1017 = vmatpush.msra.mxu0 %v1016
    %v1018 = vand.u32 %v51, 4294901760
    %1019 = vmatpush.msra.mxu0 %v1018
    %v1020 = vand.u32 %v49, 4294901760
    %1021 = vmatpush.msra.mxu0 %v1020
    %v1022 = vand.u32 %v46, 4294901760
    %v1023 = vsub.f32 %v46, %v1022
    %v1024 = vand.u32 %v1023, 4294901760
    %1025 = vmatmul.f32.gmra.mxu0 %v1024
    %v1026 = vpop.f32.mrf.mxu0
    %v1027 = vadd.f32 %v988, %v1026
    %1028 = vdwg.mxu0
    %v1029 = vand.u32 %v79, 4294901760
    %v1030 = vsub.f32 %v79, %v1029
    %v1031 = vand.u32 %v1030, 4294901760
    %1032 = vmatpush.msra.mxu0 %v1031
    %v1033 = vand.u32 %v77, 4294901760
    %v1034 = vsub.f32 %v77, %v1033
    %v1035 = vand.u32 %v1034, 4294901760
    %1036 = vmatpush.msra.mxu0 %v1035
    %v1037 = vand.u32 %v75, 4294901760
    %v1038 = vsub.f32 %v75, %v1037
    %v1039 = vand.u32 %v1038, 4294901760
    %1040 = vmatpush.msra.mxu0 %v1039
    %v1041 = vand.u32 %v73, 4294901760
    %v1042 = vsub.f32 %v73, %v1041
    %v1043 = vand.u32 %v1042, 4294901760
    %1044 = vmatpush.msra.mxu0 %v1043
    %v1045 = vand.u32 %v71, 4294901760
    %v1046 = vsub.f32 %v71, %v1045
    %v1047 = vand.u32 %v1046, 4294901760
    %1048 = vmatpush.msra.mxu0 %v1047
    %v1049 = vand.u32 %v69, 4294901760
    %v1050 = vsub.f32 %v69, %v1049
    %v1051 = vand.u32 %v1050, 4294901760
    %1052 = vmatpush.msra.mxu0 %v1051
    %v1053 = vand.u32 %v67, 4294901760
    %v1054 = vsub.f32 %v67, %v1053
    %v1055 = vand.u32 %v1054, 4294901760
    %1056 = vmatpush.msra.mxu0 %v1055
    %v1057 = vand.u32 %v65, 4294901760
    %v1058 = vsub.f32 %v65, %v1057
    %v1059 = vand.u32 %v1058, 4294901760
    %1060 = vmatpush.msra.mxu0 %v1059
    %v1061 = vand.u32 %v63, 4294901760
    %v1062 = vsub.f32 %v63, %v1061
    %v1063 = vand.u32 %v1062, 4294901760
    %1064 = vmatpush.msra.mxu0 %v1063
    %v1065 = vand.u32 %v61, 4294901760
    %v1066 = vsub.f32 %v61, %v1065
    %v1067 = vand.u32 %v1066, 4294901760
    %1068 = vmatpush.msra.mxu0 %v1067
    %v1069 = vand.u32 %v59, 4294901760
    %v1070 = vsub.f32 %v59, %v1069
    %v1071 = vand.u32 %v1070, 4294901760
    %1072 = vmatpush.msra.mxu0 %v1071
    %v1073 = vand.u32 %v57, 4294901760
    %v1074 = vsub.f32 %v57, %v1073
    %v1075 = vand.u32 %v1074, 4294901760
    %1076 = vmatpush.msra.mxu0 %v1075
    %v1077 = vand.u32 %v55, 4294901760
    %v1078 = vsub.f32 %v55, %v1077
    %v1079 = vand.u32 %v1078, 4294901760
    %1080 = vmatpush.msra.mxu0 %v1079
    %v1081 = vand.u32 %v53, 4294901760
    %v1082 = vsub.f32 %v53, %v1081
    %v1083 = vand.u32 %v1082, 4294901760
    %1084 = vmatpush.msra.mxu0 %v1083
    %v1085 = vand.u32 %v51, 4294901760
    %v1086 = vsub.f32 %v51, %v1085
    %v1087 = vand.u32 %v1086, 4294901760
    %1088 = vmatpush.msra.mxu0 %v1087
    %v1089 = vand.u32 %v49, 4294901760
    %v1090 = vsub.f32 %v49, %v1089
    %v1091 = vand.u32 %v1090, 4294901760
    %1092 = vmatpush.msra.mxu0 %v1091
    %v1093 = vand.u32 %v46, 4294901760
    %1094 = vmatmul.f32.gmra.mxu0 %v1093
    %v1095 = vpop.f32.mrf.mxu0
    %v1096 = vadd.f32 %v1027, %v1095
    %1097 = vdwg.mxu0
    %v1098 = vand.u32 %v79, 4294901760
    %1099 = vmatpush.msra.mxu0 %v1098
    %v1100 = vand.u32 %v77, 4294901760
    %1101 = vmatpush.msra.mxu0 %v1100
    %v1102 = vand.u32 %v75, 4294901760
    %1103 = vmatpush.msra.mxu0 %v1102
    %v1104 = vand.u32 %v73, 4294901760
    %1105 = vmatpush.msra.mxu0 %v1104
    %v1106 = vand.u32 %v71, 4294901760
    %1107 = vmatpush.msra.mxu0 %v1106
    %v1108 = vand.u32 %v69, 4294901760
    %1109 = vmatpush.msra.mxu0 %v1108
    %v1110 = vand.u32 %v67, 4294901760
    %1111 = vmatpush.msra.mxu0 %v1110
    %v1112 = vand.u32 %v65, 4294901760
    %1113 = vmatpush.msra.mxu0 %v1112
    %v1114 = vand.u32 %v63, 4294901760
    %1115 = vmatpush.msra.mxu0 %v1114
    %v1116 = vand.u32 %v61, 4294901760
    %1117 = vmatpush.msra.mxu0 %v1116
    %v1118 = vand.u32 %v59, 4294901760
    %1119 = vmatpush.msra.mxu0 %v1118
    %v1120 = vand.u32 %v57, 4294901760
    %1121 = vmatpush.msra.mxu0 %v1120
    %v1122 = vand.u32 %v55, 4294901760
    %1123 = vmatpush.msra.mxu0 %v1122
    %v1124 = vand.u32 %v53, 4294901760
    %1125 = vmatpush.msra.mxu0 %v1124
    %v1126 = vand.u32 %v51, 4294901760
    %1127 = vmatpush.msra.mxu0 %v1126
    %v1128 = vand.u32 %v49, 4294901760
    %1129 = vmatpush.msra.mxu0 %v1128
    %v1130 = vand.u32 %v46, 4294901760
    %1131 = vmatmul.f32.gmra.mxu0 %v1130
    %v1132 = vpop.f32.mrf.mxu0
    %v1133 = vadd.f32 %v1096, %v1132
    %1134 = vdwg.mxu0
    %v1135 = vand.u32 %v111, 4294901760
    %1136 = vmatpush.msra.mxu0 %v1135
    %v1137 = vand.u32 %v109, 4294901760
    %1138 = vmatpush.msra.mxu0 %v1137
    %v1139 = vand.u32 %v107, 4294901760
    %1140 = vmatpush.msra.mxu0 %v1139
    %v1141 = vand.u32 %v105, 4294901760
    %1142 = vmatpush.msra.mxu0 %v1141
    %v1143 = vand.u32 %v103, 4294901760
    %1144 = vmatpush.msra.mxu0 %v1143
    %v1145 = vand.u32 %v101, 4294901760
    %1146 = vmatpush.msra.mxu0 %v1145
    %v1147 = vand.u32 %v99, 4294901760
    %1148 = vmatpush.msra.mxu0 %v1147
    %v1149 = vand.u32 %v97, 4294901760
    %1150 = vmatpush.msra.mxu0 %v1149
    %v1151 = vand.u32 %v95, 4294901760
    %1152 = vmatpush.msra.mxu0 %v1151
    %v1153 = vand.u32 %v93, 4294901760
    %1154 = vmatpush.msra.mxu0 %v1153
    %v1155 = vand.u32 %v91, 4294901760
    %1156 = vmatpush.msra.mxu0 %v1155
    %v1157 = vand.u32 %v89, 4294901760
    %1158 = vmatpush.msra.mxu0 %v1157
    %v1159 = vand.u32 %v87, 4294901760
    %1160 = vmatpush.msra.mxu0 %v1159
    %v1161 = vand.u32 %v85, 4294901760
    %1162 = vmatpush.msra.mxu0 %v1161
    %v1163 = vand.u32 %v83, 4294901760
    %1164 = vmatpush.msra.mxu0 %v1163
    %v1165 = vand.u32 %v81, 4294901760
    %1166 = vmatpush.msra.mxu0 %v1165
    %v1167 = vand.u32 %v47, 4294901760
    %v1168 = vsub.f32 %v47, %v1167
    %v1169 = vand.u32 %v1168, 4294901760
    %v1170 = vsub.f32 %v1168, %v1169
    %v1171 = vand.u32 %v1170, 4294901760
    %1172 = vmatmul.f32.gmra.mxu0 %v1171
    %v1173 = vpop.f32.mrf.mxu0
    %v1174 = vadd.f32 %v1133, %v1173
    %1175 = vdwg.mxu0
    %v1176 = vand.u32 %v111, 4294901760
    %v1177 = vsub.f32 %v111, %v1176
    %v1178 = vand.u32 %v1177, 4294901760
    %v1179 = vsub.f32 %v1177, %v1178
    %v1180 = vand.u32 %v1179, 4294901760
    %1181 = vmatpush.msra.mxu0 %v1180
    %v1182 = vand.u32 %v109, 4294901760
    %v1183 = vsub.f32 %v109, %v1182
    %v1184 = vand.u32 %v1183, 4294901760
    %v1185 = vsub.f32 %v1183, %v1184
    %v1186 = vand.u32 %v1185, 4294901760
    %1187 = vmatpush.msra.mxu0 %v1186
    %v1188 = vand.u32 %v107, 4294901760
    %v1189 = vsub.f32 %v107, %v1188
    %v1190 = vand.u32 %v1189, 4294901760
    %v1191 = vsub.f32 %v1189, %v1190
    %v1192 = vand.u32 %v1191, 4294901760
    %1193 = vmatpush.msra.mxu0 %v1192
    %v1194 = vand.u32 %v105, 4294901760
    %v1195 = vsub.f32 %v105, %v1194
    %v1196 = vand.u32 %v1195, 4294901760
    %v1197 = vsub.f32 %v1195, %v1196
    %v1198 = vand.u32 %v1197, 4294901760
    %1199 = vmatpush.msra.mxu0 %v1198
    %v1200 = vand.u32 %v103, 4294901760
    %v1201 = vsub.f32 %v103, %v1200
    %v1202 = vand.u32 %v1201, 4294901760
    %v1203 = vsub.f32 %v1201, %v1202
    %v1204 = vand.u32 %v1203, 4294901760
    %1205 = vmatpush.msra.mxu0 %v1204
    %v1206 = vand.u32 %v101, 4294901760
    %v1207 = vsub.f32 %v101, %v1206
    %v1208 = vand.u32 %v1207, 4294901760
    %v1209 = vsub.f32 %v1207, %v1208
    %v1210 = vand.u32 %v1209, 4294901760
    %1211 = vmatpush.msra.mxu0 %v1210
    %v1212 = vand.u32 %v99, 4294901760
    %v1213 = vsub.f32 %v99, %v1212
    %v1214 = vand.u32 %v1213, 4294901760
    %v1215 = vsub.f32 %v1213, %v1214
    %v1216 = vand.u32 %v1215, 4294901760
    %1217 = vmatpush.msra.mxu0 %v1216
    %v1218 = vand.u32 %v97, 4294901760
    %v1219 = vsub.f32 %v97, %v1218
    %v1220 = vand.u32 %v1219, 4294901760
    %v1221 = vsub.f32 %v1219, %v1220
    %v1222 = vand.u32 %v1221, 4294901760
    %1223 = vmatpush.msra.mxu0 %v1222
    %v1224 = vand.u32 %v95, 4294901760
    %v1225 = vsub.f32 %v95, %v1224
    %v1226 = vand.u32 %v1225, 4294901760
    %v1227 = vsub.f32 %v1225, %v1226
    %v1228 = vand.u32 %v1227, 4294901760
    %1229 = vmatpush.msra.mxu0 %v1228
    %v1230 = vand.u32 %v93, 4294901760
    %v1231 = vsub.f32 %v93, %v1230
    %v1232 = vand.u32 %v1231, 4294901760
    %v1233 = vsub.f32 %v1231, %v1232
    %v1234 = vand.u32 %v1233, 4294901760
    %1235 = vmatpush.msra.mxu0 %v1234
    %v1236 = vand.u32 %v91, 4294901760
    %v1237 = vsub.f32 %v91, %v1236
    %v1238 = vand.u32 %v1237, 4294901760
    %v1239 = vsub.f32 %v1237, %v1238
    %v1240 = vand.u32 %v1239, 4294901760
    %1241 = vmatpush.msra.mxu0 %v1240
    %v1242 = vand.u32 %v89, 4294901760
    %v1243 = vsub.f32 %v89, %v1242
    %v1244 = vand.u32 %v1243, 4294901760
    %v1245 = vsub.f32 %v1243, %v1244
    %v1246 = vand.u32 %v1245, 4294901760
    %1247 = vmatpush.msra.mxu0 %v1246
    %v1248 = vand.u32 %v87, 4294901760
    %v1249 = vsub.f32 %v87, %v1248
    %v1250 = vand.u32 %v1249, 4294901760
    %v1251 = vsub.f32 %v1249, %v1250
    %v1252 = vand.u32 %v1251, 4294901760
    %1253 = vmatpush.msra.mxu0 %v1252
    %v1254 = vand.u32 %v85, 4294901760
    %v1255 = vsub.f32 %v85, %v1254
    %v1256 = vand.u32 %v1255, 4294901760
    %v1257 = vsub.f32 %v1255, %v1256
    %v1258 = vand.u32 %v1257, 4294901760
    %1259 = vmatpush.msra.mxu0 %v1258
    %v1260 = vand.u32 %v83, 4294901760
    %v1261 = vsub.f32 %v83, %v1260
    %v1262 = vand.u32 %v1261, 4294901760
    %v1263 = vsub.f32 %v1261, %v1262
    %v1264 = vand.u32 %v1263, 4294901760
    %1265 = vmatpush.msra.mxu0 %v1264
    %v1266 = vand.u32 %v81, 4294901760
    %v1267 = vsub.f32 %v81, %v1266
    %v1268 = vand.u32 %v1267, 4294901760
    %v1269 = vsub.f32 %v1267, %v1268
    %v1270 = vand.u32 %v1269, 4294901760
    %1271 = vmatpush.msra.mxu0 %v1270
    %v1272 = vand.u32 %v47, 4294901760
    %1273 = vmatmul.f32.gmra.mxu0 %v1272
    %v1274 = vpop.f32.mrf.mxu0
    %v1275 = vadd.f32 %v1174, %v1274
    %1276 = vdwg.mxu0
    %v1277 = vand.u32 %v111, 4294901760
    %v1278 = vsub.f32 %v111, %v1277
    %1279 = vmatpush.msra.mxu0 %v1278
    %v1280 = vand.u32 %v109, 4294901760
    %v1281 = vsub.f32 %v109, %v1280
    %1282 = vmatpush.msra.mxu0 %v1281
    %v1283 = vand.u32 %v107, 4294901760
    %v1284 = vsub.f32 %v107, %v1283
    %1285 = vmatpush.msra.mxu0 %v1284
    %v1286 = vand.u32 %v105, 4294901760
    %v1287 = vsub.f32 %v105, %v1286
    %1288 = vmatpush.msra.mxu0 %v1287
    %v1289 = vand.u32 %v103, 4294901760
    %v1290 = vsub.f32 %v103, %v1289
    %1291 = vmatpush.msra.mxu0 %v1290
    %v1292 = vand.u32 %v101, 4294901760
    %v1293 = vsub.f32 %v101, %v1292
    %1294 = vmatpush.msra.mxu0 %v1293
    %v1295 = vand.u32 %v99, 4294901760
    %v1296 = vsub.f32 %v99, %v1295
    %1297 = vmatpush.msra.mxu0 %v1296
    %v1298 = vand.u32 %v97, 4294901760
    %v1299 = vsub.f32 %v97, %v1298
    %1300 = vmatpush.msra.mxu0 %v1299
    %v1301 = vand.u32 %v95, 4294901760
    %v1302 = vsub.f32 %v95, %v1301
    %1303 = vmatpush.msra.mxu0 %v1302
    %v1304 = vand.u32 %v93, 4294901760
    %v1305 = vsub.f32 %v93, %v1304
    %1306 = vmatpush.msra.mxu0 %v1305
    %v1307 = vand.u32 %v91, 4294901760
    %v1308 = vsub.f32 %v91, %v1307
    %1309 = vmatpush.msra.mxu0 %v1308
    %v1310 = vand.u32 %v89, 4294901760
    %v1311 = vsub.f32 %v89, %v1310
    %1312 = vmatpush.msra.mxu0 %v1311
    %v1313 = vand.u32 %v87, 4294901760
    %v1314 = vsub.f32 %v87, %v1313
    %1315 = vmatpush.msra.mxu0 %v1314
    %v1316 = vand.u32 %v85, 4294901760
    %v1317 = vsub.f32 %v85, %v1316
    %1318 = vmatpush.msra.mxu0 %v1317
    %v1319 = vand.u32 %v83, 4294901760
    %v1320 = vsub.f32 %v83, %v1319
    %1321 = vmatpush.msra.mxu0 %v1320
    %v1322 = vand.u32 %v81, 4294901760
    %v1323 = vsub.f32 %v81, %v1322
    %1324 = vmatpush.msra.mxu0 %v1323
    %v1325 = vand.u32 %v47, 4294901760
    %v1326 = vsub.f32 %v47, %v1325
    %1327 = vmatmul.f32.gmra.mxu0 %v1326
    %v1328 = vpop.f32.mrf.mxu0
    %v1329 = vadd.f32 %v1275, %v1328
    %1330 = vdwg.mxu0
    %v1331 = vand.u32 %v111, 4294901760
    %1332 = vmatpush.msra.mxu0 %v1331
    %v1333 = vand.u32 %v109, 4294901760
    %1334 = vmatpush.msra.mxu0 %v1333
    %v1335 = vand.u32 %v107, 4294901760
    %1336 = vmatpush.msra.mxu0 %v1335
    %v1337 = vand.u32 %v105, 4294901760
    %1338 = vmatpush.msra.mxu0 %v1337
    %v1339 = vand.u32 %v103, 4294901760
    %1340 = vmatpush.msra.mxu0 %v1339
    %v1341 = vand.u32 %v101, 4294901760
    %1342 = vmatpush.msra.mxu0 %v1341
    %v1343 = vand.u32 %v99, 4294901760
    %1344 = vmatpush.msra.mxu0 %v1343
    %v1345 = vand.u32 %v97, 4294901760
    %1346 = vmatpush.msra.mxu0 %v1345
    %v1347 = vand.u32 %v95, 4294901760
    %1348 = vmatpush.msra.mxu0 %v1347
    %v1349 = vand.u32 %v93, 4294901760
    %1350 = vmatpush.msra.mxu0 %v1349
    %v1351 = vand.u32 %v91, 4294901760
    %1352 = vmatpush.msra.mxu0 %v1351
    %v1353 = vand.u32 %v89, 4294901760
    %1354 = vmatpush.msra.mxu0 %v1353
    %v1355 = vand.u32 %v87, 4294901760
    %1356 = vmatpush.msra.mxu0 %v1355
    %v1357 = vand.u32 %v85, 4294901760
    %1358 = vmatpush.msra.mxu0 %v1357
    %v1359 = vand.u32 %v83, 4294901760
    %1360 = vmatpush.msra.mxu0 %v1359
    %v1361 = vand.u32 %v81, 4294901760
    %1362 = vmatpush.msra.mxu0 %v1361
    %v1363 = vand.u32 %v47, 4294901760
    %v1364 = vsub.f32 %v47, %v1363
    %v1365 = vand.u32 %v1364, 4294901760
    %1366 = vmatmul.f32.gmra.mxu0 %v1365
    %v1367 = vpop.f32.mrf.mxu0
    %v1368 = vadd.f32 %v1329, %v1367
    %1369 = vdwg.mxu0
    %v1370 = vand.u32 %v111, 4294901760
    %v1371 = vsub.f32 %v111, %v1370
    %v1372 = vand.u32 %v1371, 4294901760
    %1373 = vmatpush.msra.mxu0 %v1372
    %v1374 = vand.u32 %v109, 4294901760
    %v1375 = vsub.f32 %v109, %v1374
    %v1376 = vand.u32 %v1375, 4294901760
    %1377 = vmatpush.msra.mxu0 %v1376
    %v1378 = vand.u32 %v107, 4294901760
    %v1379 = vsub.f32 %v107, %v1378
    %v1380 = vand.u32 %v1379, 4294901760
    %1381 = vmatpush.msra.mxu0 %v1380
    %v1382 = vand.u32 %v105, 4294901760
    %v1383 = vsub.f32 %v105, %v1382
    %v1384 = vand.u32 %v1383, 4294901760
    %1385 = vmatpush.msra.mxu0 %v1384
    %v1386 = vand.u32 %v103, 4294901760
    %v1387 = vsub.f32 %v103, %v1386
    %v1388 = vand.u32 %v1387, 4294901760
    %1389 = vmatpush.msra.mxu0 %v1388
    %v1390 = vand.u32 %v101, 4294901760
    %v1391 = vsub.f32 %v101, %v1390
    %v1392 = vand.u32 %v1391, 4294901760
    %1393 = vmatpush.msra.mxu0 %v1392
    %v1394 = vand.u32 %v99, 4294901760
    %v1395 = vsub.f32 %v99, %v1394
    %v1396 = vand.u32 %v1395, 4294901760
    %1397 = vmatpush.msra.mxu0 %v1396
    %v1398 = vand.u32 %v97, 4294901760
    %v1399 = vsub.f32 %v97, %v1398
    %v1400 = vand.u32 %v1399, 4294901760
    %1401 = vmatpush.msra.mxu0 %v1400
    %v1402 = vand.u32 %v95, 4294901760
    %v1403 = vsub.f32 %v95, %v1402
    %v1404 = vand.u32 %v1403, 4294901760
    %1405 = vmatpush.msra.mxu0 %v1404
    %v1406 = vand.u32 %v93, 4294901760
    %v1407 = vsub.f32 %v93, %v1406
    %v1408 = vand.u32 %v1407, 4294901760
    %1409 = vmatpush.msra.mxu0 %v1408
    %v1410 = vand.u32 %v91, 4294901760
    %v1411 = vsub.f32 %v91, %v1410
    %v1412 = vand.u32 %v1411, 4294901760
    %1413 = vmatpush.msra.mxu0 %v1412
    %v1414 = vand.u32 %v89, 4294901760
    %v1415 = vsub.f32 %v89, %v1414
    %v1416 = vand.u32 %v1415, 4294901760
    %1417 = vmatpush.msra.mxu0 %v1416
    %v1418 = vand.u32 %v87, 4294901760
    %v1419 = vsub.f32 %v87, %v1418
    %v1420 = vand.u32 %v1419, 4294901760
    %1421 = vmatpush.msra.mxu0 %v1420
    %v1422 = vand.u32 %v85, 4294901760
    %v1423 = vsub.f32 %v85, %v1422
    %v1424 = vand.u32 %v1423, 4294901760
    %1425 = vmatpush.msra.mxu0 %v1424
    %v1426 = vand.u32 %v83, 4294901760
    %v1427 = vsub.f32 %v83, %v1426
    %v1428 = vand.u32 %v1427, 4294901760
    %1429 = vmatpush.msra.mxu0 %v1428
    %v1430 = vand.u32 %v81, 4294901760
    %v1431 = vsub.f32 %v81, %v1430
    %v1432 = vand.u32 %v1431, 4294901760
    %1433 = vmatpush.msra.mxu0 %v1432
    %v1434 = vand.u32 %v47, 4294901760
    %1435 = vmatmul.f32.gmra.mxu0 %v1434
    %v1436 = vpop.f32.mrf.mxu0
    %v1437 = vadd.f32 %v1368, %v1436
    %1438 = vdwg.mxu0
    %v1439 = vand.u32 %v111, 4294901760
    %1440 = vmatpush.msra.mxu0 %v1439
    %v1441 = vand.u32 %v109, 4294901760
    %1442 = vmatpush.msra.mxu0 %v1441
    %v1443 = vand.u32 %v107, 4294901760
    %1444 = vmatpush.msra.mxu0 %v1443
    %v1445 = vand.u32 %v105, 4294901760
    %1446 = vmatpush.msra.mxu0 %v1445
    %v1447 = vand.u32 %v103, 4294901760
    %1448 = vmatpush.msra.mxu0 %v1447
    %v1449 = vand.u32 %v101, 4294901760
    %1450 = vmatpush.msra.mxu0 %v1449
    %v1451 = vand.u32 %v99, 4294901760
    %1452 = vmatpush.msra.mxu0 %v1451
    %v1453 = vand.u32 %v97, 4294901760
    %1454 = vmatpush.msra.mxu0 %v1453
    %v1455 = vand.u32 %v95, 4294901760
    %1456 = vmatpush.msra.mxu0 %v1455
    %v1457 = vand.u32 %v93, 4294901760
    %1458 = vmatpush.msra.mxu0 %v1457
    %v1459 = vand.u32 %v91, 4294901760
    %1460 = vmatpush.msra.mxu0 %v1459
    %v1461 = vand.u32 %v89, 4294901760
    %1462 = vmatpush.msra.mxu0 %v1461
    %v1463 = vand.u32 %v87, 4294901760
    %1464 = vmatpush.msra.mxu0 %v1463
    %v1465 = vand.u32 %v85, 4294901760
    %1466 = vmatpush.msra.mxu0 %v1465
    %v1467 = vand.u32 %v83, 4294901760
    %1468 = vmatpush.msra.mxu0 %v1467
    %v1469 = vand.u32 %v81, 4294901760
    %1470 = vmatpush.msra.mxu0 %v1469
    %v1471 = vand.u32 %v47, 4294901760
    %1472 = vmatmul.f32.gmra.mxu0 %v1471
    %v1473 = vpop.f32.mrf.mxu0
    %v1474 = vadd.f32 %v1437, %v1473
    %1475 = vdwg.mxu0
    %v1476 = vsub.f32 %v46, %v792
    %v1477 = vsub.f32 %v47, %v1474
    %v1478 = vand.u32 2147483647, %v1476
    %v1479 = vand.u32 2147483647, %v1477
    %1480 = vst [vmem:[#allocation7] sm:$0xff] %v1478
    %1481 = vst [vmem:[#allocation7 + $0x8] sm:$0xff] %v1479
    %v1482 = vmin.f32 %v1478, %v1479
    %1483 = vmin.xlane.f32.xlu0 %v1482
    %v1484 = vpop.xlane.xlu0 %1483
    %v1485 = vmax.f32 %v1478, %v1479
    %1486 = vmax.xlane.f32.xlu0 %v1485
    %v1487 = vpop.xlane.xlu0 %1486
    %v1488 = vrot.slane %v1484, 4
    %v1489 = vmin.f32 %v1484, %v1488
    %v1490 = vrot.slane %v1489, 2
    %v1491 = vmin.f32 %v1489, %v1490
    %v1492 = vrot.slane %v1491, 1
    %v1493 = vmin.f32 %v1491, %v1492
    %vm1494 = vcmask 0
    %1495 = vst.msk [vmem:[#allocation8] sm:$0x1] %vm1494, %v1493
    %v1496 = vrot.slane %v1487, 4
    %v1497 = vmax.f32 %v1487, %v1496
    %v1498 = vrot.slane %v1497, 2
    %v1499 = vmax.f32 %v1497, %v1498
    %v1500 = vrot.slane %v1499, 1
    %v1501 = vmax.f32 %v1499, %v1500
    %1502 = vst.msk [vmem:[#allocation10] sm:$0x1] %vm1494, %v1501
    // Predicated region
    $region18: #{tpu_custom_call.1} parent=1 // pred_check
      _
    $region19: #{tpu_custom_call.1} parent=1 // pred_check_branch
      %1504 = sbr.rel (0) target = $region21
    $region20: #{tpu_custom_call.1} parent=1 // pred_region
      %1506 = vsyncadd [#allocation4], 0
      %s1508 = sshll.u32 [#allocation7], 4
      %s1509 = int_to_ptr.vmem [resolvable:$true] %s1508
      %s1510 = sshll.u32 %s2, 4
      %s1511 = int_to_ptr.hbm [resolvable:$true] %s1510
      %1513 = dma.vmem_to_hbm [thread:$0]  %s1509, 256, %s1511, [#allocation4]
    $region21: #{tpu_custom_call.1} parent=1 // pred_fallthru
      _
    // Predicated region
    $region22: #{tpu_custom_call.1} parent=1 // pred_check
      _
    $region23: #{tpu_custom_call.1} parent=1 // pred_check_branch
      %1515 = sbr.rel (0) target = $region25
    $region24: #{tpu_custom_call.1} parent=1 // pred_region
      %1517 = vsyncadd [#allocation9], 0
      %s1519 = sshll.u32 [#allocation8], 4
      %s1520 = int_to_ptr.vmem [resolvable:$true] %s1519
      %s1521 = sshll.u32 %s3, 4
      %s1522 = int_to_ptr.hbm [resolvable:$true] %s1521
      %1524 = dma.vmem_to_hbm [thread:$0]  %s1520, 16, %s1522, [#allocation9]
    $region25: #{tpu_custom_call.1} parent=1 // pred_fallthru
      _
    // Predicated region
    $region26: #{tpu_custom_call.1} parent=1 // pred_check
      _
    $region27: #{tpu_custom_call.1} parent=1 // pred_check_branch
      %1526 = sbr.rel (0) target = $region29
    $region28: #{tpu_custom_call.1} parent=1 // pred_region
      %1528 = vsyncadd [#allocation9], 0
      %s1530 = sshll.u32 [#allocation10], 4
      %s1531 = int_to_ptr.vmem [resolvable:$true] %s1530
      %s1532 = sshll.u32 %s4, 4
      %s1533 = int_to_ptr.hbm [resolvable:$true] %s1532
      %1535 = dma.vmem_to_hbm [thread:$0]  %s1531, 16, %s1533, [#allocation9]
    $region29: #{tpu_custom_call.1} parent=1 // pred_fallthru
      _
    // Predicated region
    $region30: #{tpu_custom_call.1} parent=1 // pred_check
      _
    $region31: #{tpu_custom_call.1} parent=1 // pred_check_branch
      %1537 = sbr.rel (0) target = $region33
    $region32: #{tpu_custom_call.1} parent=1 // pred_region
      %1539 = dma.done [#allocation4], 256
    $region33: #{tpu_custom_call.1} parent=1 // pred_fallthru
      _
    // Predicated region
    $region34: #{tpu_custom_call.1} parent=1 // pred_check
      _
    $region35: #{tpu_custom_call.1} parent=1 // pred_check_branch
      %1541 = sbr.rel (0) target = $region37
    $region36: #{tpu_custom_call.1} parent=1 // pred_region
      %1543 = dma.done [#allocation9], 16
    $region37: #{tpu_custom_call.1} parent=1 // pred_fallthru
      _
    // Predicated region
    $region38: #{tpu_custom_call.1} parent=1 // pred_check
      _
    $region39: #{tpu_custom_call.1} parent=1 // pred_check_branch
      %1545 = sbr.rel (0) target = $region41
    $region40: #{tpu_custom_call.1} parent=1 // pred_region
      %1547 = dma.done [#allocation9], 16
    $region41: #{tpu_custom_call.1} parent=1 // pred_fallthru
      _
    %1548 = vsyncpa [#allocation3], 1
    %1549 = vsyncpa [#allocation6], 1
    %1550 = vsyncpa [#allocation4], 1
    %1551 = vsyncpa [#allocation9], 1

</llo_original>
